<compile_context>
chip_gen: v6e
topology: v6e:2x2x1
jax: 0.10.0
libtpu: 0.0.40
codegen_flags: <defaults>
</compile_context>

<pallas_src>
import jax
import jax.numpy as jnp
import numpy as np
from jax import lax
from jax.experimental import pallas as pl
from jax.experimental.pallas import tpu as pltpu

# ---- config (mirrors the cfg.* values used in the PyTorch module __init__) ----
INPUT_DIM = 4        # data.input_dim
SEQ_LEN = 8          # data.seq_len
OUTPUT_DIM = 16      # model.output_dim
HIDDEN_DIM = 32      # model.hidden_dim
NUM_LAYERS = 1       # model.num_layers (dropout inactive for 1 layer / eval)
KERNEL_SIZE = 3      # model.kernel_size
OUTPUT_LEN = 4       # model.output_len
BIDIRECTIONAL = True
BATCH = 2            # train.batch_size
PAD = (KERNEL_SIZE - 1) // 2
BI = 2 if BIDIRECTIONAL else 1

assert SEQ_LEN % OUTPUT_LEN == 0  # uniform adaptive-max-pool windows for this config


# ---------------------------------------------------------------------------
# Single fused kernel.
# ---------------------------------------------------------------------------
def binary_pred_kernel(xpair_ref, wx_ref, bias_ref, wh_ref, w1T_ref, b1_ref,
                       w2T_ref, b2_ref, convwT_ref, predw_ref, out_ref):
    S, B, H, O = SEQ_LEN, BATCH, HIDDEN_DIM, OUTPUT_DIM
    K, P = KERNEL_SIZE, OUTPUT_LEN
    pad = (K - 1) // 2
    H2 = 2 * H
    win = S // P
    f32, bf16 = jnp.float32, jnp.bfloat16

    # ---- hoisted input projection: all timesteps, both directions, ONE matmul ----
    # xpair row (s*B + b) = [x[s, b] | x[S-1-s, b]]; wx rows [:I] hold fwd weights
    # feeding the fwd gate columns, rows [I:] hold bwd weights feeding bwd columns.
    # Gate column layout (interleaved): [i_f i_b f_f f_b o_f o_b g_f g_b], H each.
    xproj = jnp.dot(xpair_ref[...], wx_ref[...],
                    preferred_element_type=f32) + bias_ref[...]          # (S*B, 8H)

    wh = wh_ref[...]                                                     # (2H, 8H) bf16
    h = jnp.zeros((B, H2), f32)                                          # [h_f | h_b]
    c = jnp.zeros((B, H2), f32)                                          # [c_f | c_b]
    hs = []
    # Fully unrolled serial recurrence; one block-diagonal recurrent matmul,
    # one sigmoid (6H) and one tanh (2H) cover BOTH directions per step.
    for s in range(S):
        pre = xproj[s * B:(s + 1) * B, :]                                # (B, 8H)
        if s == 0:        # zero initial state -> recurrent matmul contributes nothing
            g = pre
        else:
            g = pre + jnp.dot(h.astype(bf16), wh, preferred_element_type=f32)
        sg = jax.nn.sigmoid(g[:, :6 * H])                                # [i | f | o], 2H each
        gg = jnp.tanh(g[:, 6 * H:])                                      # [g_f | g_b]
        c = sg[:, H2:2 * H2] * c + sg[:, :H2] * gg
        h = sg[:, 2 * H2:3 * H2] * jnp.tanh(c)
        hs.append(h)

    # ---- register-resident LSTM outputs -> (S*B, 2H), time-major rows (t*B + b) ----
    # forward output at time t = hs[t][:, :H]; backward output at time t = hs[S-1-t][:, H:]
    y_in = jnp.concatenate(
        [jnp.concatenate([hs[t][:, :H], hs[S - 1 - t][:, H:]], axis=-1)
         for t in range(S)], axis=0)                                     # (S*B, 2H)

    # ---- MLP (Linear -> ReLU -> Linear), batched over all (t, b) positions ----
    z1 = jnp.dot(y_in.astype(bf16), w1T_ref[...],
                 preferred_element_type=f32) + b1_ref[...]
    y1 = jnp.maximum(z1, 0.0)
    y2 = jnp.dot(y1.astype(bf16), w2T_ref[...],
                 preferred_element_type=f32) + b2_ref[...]               # (S*B, O)

    # ---- Conv1d (no bias, 'same' padding) as ONE im2col matmul + ReLU ----
    zpad = jnp.zeros((pad * B, O), f32)
    y2p = jnp.concatenate([zpad, y2, zpad], axis=0)                      # ((S+2p)*B, O)
    xcol = jnp.concatenate([y2p[j * B:j * B + S * B, :] for j in range(K)],
                           axis=-1)                                      # (S*B, K*O)
    conv = jnp.maximum(
        jnp.dot(xcol.astype(bf16), convwT_ref[...],
                preferred_element_type=f32), 0.0)                        # (S*B, O)

    # ---- AdaptiveMaxPool1d (uniform windows) + flatten + Linear(no bias) + sigmoid ----
    # predw[p, c] == torch pred_head.weight[0, c*P + p]
    out = jnp.zeros((B, 1), f32)
    for p in range(P):
        blk = conv[p * win * B:(p + 1) * win * B, :]                     # (win*B, O)
        m = blk[:B, :]
        for w in range(1, win):
            m = jnp.maximum(m, blk[w * B:(w + 1) * B, :])                # (B, O)
        out = out + jnp.sum(m * predw_ref[p:p + 1, :], axis=-1, keepdims=True)
    out_ref[...] = jax.nn.sigmoid(out)


# ---------------------------------------------------------------------------
# Wrapper: single pallas_call, no grid, no scratch — total footprint is a few KB.
# ---------------------------------------------------------------------------
@jax.jit
def forward(x, kp):
    S, B, I = x.shape
    # Pair each timestep with its reversed counterpart so the fwd+bwd input
    # projection is a single matmul and each step's gates are one row slice.
    xpair = jnp.concatenate([x, x[::-1]], axis=-1).reshape(S * B, 2 * I)
    xpair = xpair.astype(jnp.bfloat16)
    vmem = pl.BlockSpec(memory_space=pltpu.MemorySpace.VMEM)
    return pl.pallas_call(
        binary_pred_kernel,
        out_shape=jax.ShapeDtypeStruct((B, 1), jnp.float32),
        in_specs=[vmem] * 10,
        out_specs=vmem,
    )(xpair, kp['wx'], kp['bias'], kp['wh'], kp['w1T'], kp['b1'],
      kp['w2T'], kp['b2'], kp['convwT'], kp['predw'])


# ---------------------------------------------------------------------------
# Pure-JAX reference (mirrors the PyTorch forward exactly)
# ---------------------------------------------------------------------------
def reference(x, raw):
    H = HIDDEN_DIM

    def lstm_dir(W_ih, W_hh, b_ih, b_hh, reverse):
        S, B, _ = x.shape
        h = jnp.zeros((B, H), jnp.float32)
        c = jnp.zeros((B, H), jnp.float32)
        outs = [None] * S
        ts = list(range(S - 1, -1, -1)) if reverse else list(range(S))
        for t in ts:
            gates = x[t] @ W_ih.T + b_ih + h @ W_hh.T + b_hh
            i = jax.nn.sigmoid(gates[:, :H])
            f = jax.nn.sigmoid(gates[:, H:2 * H])
            g = jnp.tanh(gates[:, 2 * H:3 * H])
            o = jax.nn.sigmoid(gates[:, 3 * H:])
            c = f * c + i * g
            h = o * jnp.tanh(c)
            outs[t] = h
        return jnp.stack(outs, 0)

    hf = lstm_dir(raw['w_ih_f'], raw['w_hh_f'], raw['b_ih_f'], raw['b_hh_f'], False)
    hb = lstm_dir(raw['w_ih_b'], raw['w_hh_b'], raw['b_ih_b'], raw['b_hh_b'], True)
    y = jnp.concatenate([hf, hb], axis=-1)                 # (S, B, 2H)
    y = jnp.transpose(y, (1, 0, 2))                        # (B, S, 2H)
    y = jax.nn.relu(y @ raw['w1'].T + raw['b1']) @ raw['w2'].T + raw['b2']   # (B, S, O)
    y = jnp.transpose(y, (0, 2, 1))                        # (B, O, S)  NCL
    y = lax.conv_general_dilated(y, raw['wc'], window_strides=(1,),
                                 padding=[(PAD, PAD)],
                                 dimension_numbers=('NCH', 'OIH', 'NCH'))
    y = jax.nn.relu(y)
    L = y.shape[-1]
    pooled = []
    for i in range(OUTPUT_LEN):
        s = (i * L) // OUTPUT_LEN
        e = -(-((i + 1) * L) // OUTPUT_LEN)
        pooled.append(jnp.max(y[:, :, s:e], axis=-1))
    pooled = jnp.stack(pooled, axis=-1)                    # (B, O, P)
    flat = pooled.reshape(pooled.shape[0], -1)             # (B, O*P)
    return jax.nn.sigmoid(flat @ raw['wp'].T)              # (B, 1)


if __name__ == "__main__":
    key = jax.random.PRNGKey(0)
    ks = jax.random.split(key, 14)

    def u(k, shape, scale):
        return jax.random.uniform(k, shape, jnp.float32, -scale, scale)

    s_lstm = 1.0 / np.sqrt(HIDDEN_DIM)
    raw = dict(
        w_ih_f=u(ks[0], (4 * HIDDEN_DIM, INPUT_DIM), s_lstm),
        w_hh_f=u(ks[1], (4 * HIDDEN_DIM, HIDDEN_DIM), s_lstm),
        b_ih_f=u(ks[2], (4 * HIDDEN_DIM,), s_lstm),
        b_hh_f=u(ks[3], (4 * HIDDEN_DIM,), s_lstm),
        w_ih_b=u(ks[4], (4 * HIDDEN_DIM, INPUT_DIM), s_lstm),
        w_hh_b=u(ks[5], (4 * HIDDEN_DIM, HIDDEN_DIM), s_lstm),
        b_ih_b=u(ks[6], (4 * HIDDEN_DIM,), s_lstm),
        b_hh_b=u(ks[7], (4 * HIDDEN_DIM,), s_lstm),
        w1=u(ks[8], (OUTPUT_DIM, BI * HIDDEN_DIM), 1.0 / np.sqrt(BI * HIDDEN_DIM)),
        b1=u(ks[9], (OUTPUT_DIM,), 1.0 / np.sqrt(BI * HIDDEN_DIM)),
        w2=u(ks[10], (OUTPUT_DIM, OUTPUT_DIM), 1.0 / np.sqrt(OUTPUT_DIM)),
        b2=u(ks[11], (OUTPUT_DIM,), 1.0 / np.sqrt(OUTPUT_DIM)),
        wc=u(ks[12], (OUTPUT_DIM, OUTPUT_DIM, KERNEL_SIZE),
             1.0 / np.sqrt(OUTPUT_DIM * KERNEL_SIZE)),
        wp=u(ks[13], (1, OUTPUT_LEN * OUTPUT_DIM), 1.0 / np.sqrt(OUTPUT_LEN * OUTPUT_DIM)),
    )

    x = jax.random.normal(jax.random.PRNGKey(1), (SEQ_LEN, BATCH, INPUT_DIM), jnp.float32)

    # ---- kernel-friendly parameter layout (host-side glue) ----
    H, I, O, K, P = HIDDEN_DIM, INPUT_DIM, OUTPUT_DIM, KERNEL_SIZE, OUTPUT_LEN
    # torch gate row order [i, f, g, o] -> per-direction column order [i, f, o, g]
    perm4 = np.concatenate([np.arange(0, H), np.arange(H, 2 * H),
                            np.arange(3 * H, 4 * H), np.arange(2 * H, 3 * H)])
    # grouped [fwd:(i f o g) | bwd:(i f o g)] -> interleaved [i_f i_b f_f f_b o_f o_b g_f g_b]
    perm8 = np.concatenate([np.arange(0, H), np.arange(4 * H, 5 * H),
                            np.arange(H, 2 * H), np.arange(5 * H, 6 * H),
                            np.arange(2 * H, 3 * H), np.arange(6 * H, 7 * H),
                            np.arange(3 * H, 4 * H), np.arange(7 * H, 8 * H)])

    wihT_f = np.asarray(raw['w_ih_f'])[perm4].T          # (I, 4H)
    wihT_b = np.asarray(raw['w_ih_b'])[perm4].T
    whhT_f = np.asarray(raw['w_hh_f'])[perm4].T          # (H, 4H)
    whhT_b = np.asarray(raw['w_hh_b'])[perm4].T
    bf = (np.asarray(raw['b_ih_f']) + np.asarray(raw['b_hh_f']))[perm4]
    bb = (np.asarray(raw['b_ih_b']) + np.asarray(raw['b_hh_b']))[perm4]

    wx = np.zeros((2 * I, 8 * H), np.float32)            # paired-input projection weight
    wx[:I, :4 * H] = wihT_f
    wx[I:, 4 * H:] = wihT_b
    wx = wx[:, perm8]                                    # (2I, 8H), interleaved gate cols

    wh = np.zeros((2 * H, 8 * H), np.float32)            # block-diagonal recurrent weight
    wh[:H, :4 * H] = whhT_f
    wh[H:, 4 * H:] = whhT_b
    wh = wh[:, perm8]                                    # (2H, 8H)

    bias = np.concatenate([bf, bb])[perm8].reshape(1, 8 * H)

    convwT = np.transpose(np.asarray(raw['wc']), (2, 1, 0)).reshape(K * O, O)  # im2col weight
    predw = np.asarray(raw['wp']).reshape(O, P).T        # (P, O): predw[p, c] = wp[0, c*P+p]

    kp = dict(
        wx=jnp.asarray(wx, jnp.bfloat16),
        bias=jnp.asarray(bias, jnp.float32),
        wh=jnp.asarray(wh, jnp.bfloat16),
        w1T=jnp.asarray(np.asarray(raw['w1']).T, jnp.bfloat16),   # (2H, O)
        b1=jnp.asarray(np.asarray(raw['b1']).reshape(1, -1), jnp.float32),
        w2T=jnp.asarray(np.asarray(raw['w2']).T, jnp.bfloat16),   # (O, O)
        b2=jnp.asarray(np.asarray(raw['b2']).reshape(1, -1), jnp.float32),
        convwT=jnp.asarray(convwT, jnp.bfloat16),                 # (K*O, O)
        predw=jnp.asarray(predw, jnp.float32),                    # (P, O)
    )

    out = jax.block_until_ready(forward(x, kp))
    ref = jax.block_until_ready(reference(x, raw))

    assert out.shape == (BATCH, 1), out.shape
    np.testing.assert_allclose(np.asarray(out), np.asarray(ref), atol=2e-2, rtol=2e-2)
    print("KERNEL_OK")
</pallas_src>

<mosaic_0001>
module attributes {stable_mosaic.version = 11 : i64} {
  func.func @binary_pred_kernel(%arg0: memref<16x8xbf16, #tpu.memory_space<vmem>>, %arg1: memref<8x256xbf16, #tpu.memory_space<vmem>>, %arg2: memref<1x256xf32, #tpu.memory_space<vmem>>, %arg3: memref<64x256xbf16, #tpu.memory_space<vmem>>, %arg4: memref<64x16xbf16, #tpu.memory_space<vmem>>, %arg5: memref<1x16xf32, #tpu.memory_space<vmem>>, %arg6: memref<16x16xbf16, #tpu.memory_space<vmem>>, %arg7: memref<1x16xf32, #tpu.memory_space<vmem>>, %arg8: memref<48x16xbf16, #tpu.memory_space<vmem>>, %arg9: memref<4x16xf32, #tpu.memory_space<vmem>>, %arg10: memref<2x1xf32, #tpu.memory_space<vmem>>) attributes {dimension_semantics = [], scalar_prefetch = 0 : i64, scratch_operands = 0 : i64, tpu.core_type = #tpu.core_type<tc>} {
    %c0 = arith.constant 0 : index
    %c0_0 = arith.constant 0 : index
    %0 = vector.load %arg0[%c0, %c0_0] : memref<16x8xbf16, #tpu.memory_space<vmem>>, vector<16x8xbf16>
    %c0_1 = arith.constant 0 : index
    %c0_2 = arith.constant 0 : index
    %1 = vector.load %arg1[%c0_1, %c0_2] : memref<8x256xbf16, #tpu.memory_space<vmem>>, vector<8x256xbf16>
    %cst = arith.constant dense<0.000000e+00> : vector<16x256xf32>
    %2 = tpu.matmul %0, %1, %cst {dimension_numbers = #tpu.dot_dimension_numbers<[1], [0], [0], [1], [0, 0, 1, 1], [], []>} : vector<16x8xbf16>, vector<8x256xbf16>, vector<16x256xf32> -> vector<16x256xf32>
    %c0_3 = arith.constant 0 : index
    %c0_4 = arith.constant 0 : index
    %3 = vector.load %arg2[%c0_3, %c0_4] : memref<1x256xf32, #tpu.memory_space<vmem>>, vector<1x256xf32>
    %4 = vector.broadcast %3 : vector<1x256xf32> to vector<16x256xf32>
    %5 = arith.addf %2, %4 : vector<16x256xf32>
    %c0_5 = arith.constant 0 : index
    %c0_6 = arith.constant 0 : index
    %6 = vector.load %arg3[%c0_5, %c0_6] : memref<64x256xbf16, #tpu.memory_space<vmem>>, vector<64x256xbf16>
    %cst_7 = arith.constant 0.000000e+00 : f32
    %7 = vector.broadcast %cst_7 : f32 to vector<2x64xf32>
    %8 = vector.extract_strided_slice %5 {offsets = [0, 0], sizes = [2, 256], strides = [1, 1]} : vector<16x256xf32> to vector<2x256xf32>
    %9 = vector.extract_strided_slice %8 {offsets = [0, 0], sizes = [2, 192], strides = [1, 1]} : vector<2x256xf32> to vector<2x192xf32>
    %10 = arith.negf %9 : vector<2x192xf32>
    %11 = math.exp %10 : vector<2x192xf32>
    %cst_8 = arith.constant 1.000000e+00 : f32
    %12 = vector.broadcast %cst_8 : f32 to vector<2x192xf32>
    %13 = arith.addf %12, %11 : vector<2x192xf32>
    %14 = arith.divf %12, %13 : vector<2x192xf32>
    %15 = vector.extract_strided_slice %8 {offsets = [0, 192], sizes = [2, 64], strides = [1, 1]} : vector<2x256xf32> to vector<2x64xf32>
    %16 = math.tanh %15 : vector<2x64xf32>
    %17 = vector.extract_strided_slice %14 {offsets = [0, 64], sizes = [2, 64], strides = [1, 1]} : vector<2x192xf32> to vector<2x64xf32>
    %18 = arith.mulf %17, %7 : vector<2x64xf32>
    %19 = vector.extract_strided_slice %14 {offsets = [0, 0], sizes = [2, 64], strides = [1, 1]} : vector<2x192xf32> to vector<2x64xf32>
    %20 = arith.mulf %19, %16 : vector<2x64xf32>
    %21 = arith.addf %18, %20 : vector<2x64xf32>
    %22 = vector.extract_strided_slice %14 {offsets = [0, 128], sizes = [2, 64], strides = [1, 1]} : vector<2x192xf32> to vector<2x64xf32>
    %23 = math.tanh %21 : vector<2x64xf32>
    %24 = arith.mulf %22, %23 : vector<2x64xf32>
    %25 = vector.extract_strided_slice %5 {offsets = [2, 0], sizes = [2, 256], strides = [1, 1]} : vector<16x256xf32> to vector<2x256xf32>
    %26 = arith.truncf %24 : vector<2x64xf32> to vector<2x64xbf16>
    %cst_9 = arith.constant dense<0.000000e+00> : vector<2x256xf32>
    %27 = tpu.matmul %26, %6, %cst_9 {dimension_numbers = #tpu.dot_dimension_numbers<[1], [0], [0], [1], [0, 0, 1, 1], [], []>} : vector<2x64xbf16>, vector<64x256xbf16>, vector<2x256xf32> -> vector<2x256xf32>
    %28 = arith.addf %25, %27 : vector<2x256xf32>
    %29 = vector.extract_strided_slice %28 {offsets = [0, 0], sizes = [2, 192], strides = [1, 1]} : vector<2x256xf32> to vector<2x192xf32>
    %30 = arith.negf %29 : vector<2x192xf32>
    %31 = math.exp %30 : vector<2x192xf32>
    %cst_10 = arith.constant 1.000000e+00 : f32
    %32 = vector.broadcast %cst_10 : f32 to vector<2x192xf32>
    %33 = arith.addf %32, %31 : vector<2x192xf32>
    %34 = arith.divf %32, %33 : vector<2x192xf32>
    %35 = vector.extract_strided_slice %28 {offsets = [0, 192], sizes = [2, 64], strides = [1, 1]} : vector<2x256xf32> to vector<2x64xf32>
    %36 = math.tanh %35 : vector<2x64xf32>
    %37 = vector.extract_strided_slice %34 {offsets = [0, 64], sizes = [2, 64], strides = [1, 1]} : vector<2x192xf32> to vector<2x64xf32>
    %38 = arith.mulf %37, %21 : vector<2x64xf32>
    %39 = vector.extract_strided_slice %34 {offsets = [0, 0], sizes = [2, 64], strides = [1, 1]} : vector<2x192xf32> to vector<2x64xf32>
    %40 = arith.mulf %39, %36 : vector<2x64xf32>
    %41 = arith.addf %38, %40 : vector<2x64xf32>
    %42 = vector.extract_strided_slice %34 {offsets = [0, 128], sizes = [2, 64], strides = [1, 1]} : vector<2x192xf32> to vector<2x64xf32>
    %43 = math.tanh %41 : vector<2x64xf32>
    %44 = arith.mulf %42, %43 : vector<2x64xf32>
    %45 = vector.extract_strided_slice %5 {offsets = [4, 0], sizes = [2, 256], strides = [1, 1]} : vector<16x256xf32> to vector<2x256xf32>
    %46 = arith.truncf %44 : vector<2x64xf32> to vector<2x64xbf16>
    %cst_11 = arith.constant dense<0.000000e+00> : vector<2x256xf32>
    %47 = tpu.matmul %46, %6, %cst_11 {dimension_numbers = #tpu.dot_dimension_numbers<[1], [0], [0], [1], [0, 0, 1, 1], [], []>} : vector<2x64xbf16>, vector<64x256xbf16>, vector<2x256xf32> -> vector<2x256xf32>
    %48 = arith.addf %45, %47 : vector<2x256xf32>
    %49 = vector.extract_strided_slice %48 {offsets = [0, 0], sizes = [2, 192], strides = [1, 1]} : vector<2x256xf32> to vector<2x192xf32>
    %50 = arith.negf %49 : vector<2x192xf32>
    %51 = math.exp %50 : vector<2x192xf32>
    %cst_12 = arith.constant 1.000000e+00 : f32
    %52 = vector.broadcast %cst_12 : f32 to vector<2x192xf32>
    %53 = arith.addf %52, %51 : vector<2x192xf32>
    %54 = arith.divf %52, %53 : vector<2x192xf32>
    %55 = vector.extract_strided_slice %48 {offsets = [0, 192], sizes = [2, 64], strides = [1, 1]} : vector<2x256xf32> to vector<2x64xf32>
    %56 = math.tanh %55 : vector<2x64xf32>
    %57 = vector.extract_strided_slice %54 {offsets = [0, 64], sizes = [2, 64], strides = [1, 1]} : vector<2x192xf32> to vector<2x64xf32>
    %58 = arith.mulf %57, %41 : vector<2x64xf32>
    %59 = vector.extract_strided_slice %54 {offsets = [0, 0], sizes = [2, 64], strides = [1, 1]} : vector<2x192xf32> to vector<2x64xf32>
    %60 = arith.mulf %59, %56 : vector<2x64xf32>
    %61 = arith.addf %58, %60 : vector<2x64xf32>
    %62 = vector.extract_strided_slice %54 {offsets = [0, 128], sizes = [2, 64], strides = [1, 1]} : vector<2x192xf32> to vector<2x64xf32>
    %63 = math.tanh %61 : vector<2x64xf32>
    %64 = arith.mulf %62, %63 : vector<2x64xf32>
    %65 = vector.extract_strided_slice %5 {offsets = [6, 0], sizes = [2, 256], strides = [1, 1]} : vector<16x256xf32> to vector<2x256xf32>
    %66 = arith.truncf %64 : vector<2x64xf32> to vector<2x64xbf16>
    %cst_13 = arith.constant dense<0.000000e+00> : vector<2x256xf32>
    %67 = tpu.matmul %66, %6, %cst_13 {dimension_numbers = #tpu.dot_dimension_numbers<[1], [0], [0], [1], [0, 0, 1, 1], [], []>} : vector<2x64xbf16>, vector<64x256xbf16>, vector<2x256xf32> -> vector<2x256xf32>
    %68 = arith.addf %65, %67 : vector<2x256xf32>
    %69 = vector.extract_strided_slice %68 {offsets = [0, 0], sizes = [2, 192], strides = [1, 1]} : vector<2x256xf32> to vector<2x192xf32>
    %70 = arith.negf %69 : vector<2x192xf32>
    %71 = math.exp %70 : vector<2x192xf32>
    %cst_14 = arith.constant 1.000000e+00 : f32
    %72 = vector.broadcast %cst_14 : f32 to vector<2x192xf32>
    %73 = arith.addf %72, %71 : vector<2x192xf32>
    %74 = arith.divf %72, %73 : vector<2x192xf32>
    %75 = vector.extract_strided_slice %68 {offsets = [0, 192], sizes = [2, 64], strides = [1, 1]} : vector<2x256xf32> to vector<2x64xf32>
    %76 = math.tanh %75 : vector<2x64xf32>
    %77 = vector.extract_strided_slice %74 {offsets = [0, 64], sizes = [2, 64], strides = [1, 1]} : vector<2x192xf32> to vector<2x64xf32>
    %78 = arith.mulf %77, %61 : vector<2x64xf32>
    %79 = vector.extract_strided_slice %74 {offsets = [0, 0], sizes = [2, 64], strides = [1, 1]} : vector<2x192xf32> to vector<2x64xf32>
    %80 = arith.mulf %79, %76 : vector<2x64xf32>
    %81 = arith.addf %78, %80 : vector<2x64xf32>
    %82 = vector.extract_strided_slice %74 {offsets = [0, 128], sizes = [2, 64], strides = [1, 1]} : vector<2x192xf32> to vector<2x64xf32>
    %83 = math.tanh %81 : vector<2x64xf32>
    %84 = arith.mulf %82, %83 : vector<2x64xf32>
    %85 = vector.extract_strided_slice %5 {offsets = [8, 0], sizes = [2, 256], strides = [1, 1]} : vector<16x256xf32> to vector<2x256xf32>
    %86 = arith.truncf %84 : vector<2x64xf32> to vector<2x64xbf16>
    %cst_15 = arith.constant dense<0.000000e+00> : vector<2x256xf32>
    %87 = tpu.matmul %86, %6, %cst_15 {dimension_numbers = #tpu.dot_dimension_numbers<[1], [0], [0], [1], [0, 0, 1, 1], [], []>} : vector<2x64xbf16>, vector<64x256xbf16>, vector<2x256xf32> -> vector<2x256xf32>
    %88 = arith.addf %85, %87 : vector<2x256xf32>
    %89 = vector.extract_strided_slice %88 {offsets = [0, 0], sizes = [2, 192], strides = [1, 1]} : vector<2x256xf32> to vector<2x192xf32>
    %90 = arith.negf %89 : vector<2x192xf32>
    %91 = math.exp %90 : vector<2x192xf32>
    %cst_16 = arith.constant 1.000000e+00 : f32
    %92 = vector.broadcast %cst_16 : f32 to vector<2x192xf32>
    %93 = arith.addf %92, %91 : vector<2x192xf32>
    %94 = arith.divf %92, %93 : vector<2x192xf32>
    %95 = vector.extract_strided_slice %88 {offsets = [0, 192], sizes = [2, 64], strides = [1, 1]} : vector<2x256xf32> to vector<2x64xf32>
    %96 = math.tanh %95 : vector<2x64xf32>
    %97 = vector.extract_strided_slice %94 {offsets = [0, 64], sizes = [2, 64], strides = [1, 1]} : vector<2x192xf32> to vector<2x64xf32>
    %98 = arith.mulf %97, %81 : vector<2x64xf32>
    %99 = vector.extract_strided_slice %94 {offsets = [0, 0], sizes = [2, 64], strides = [1, 1]} : vector<2x192xf32> to vector<2x64xf32>
    %100 = arith.mulf %99, %96 : vector<2x64xf32>
    %101 = arith.addf %98, %100 : vector<2x64xf32>
    %102 = vector.extract_strided_slice %94 {offsets = [0, 128], sizes = [2, 64], strides = [1, 1]} : vector<2x192xf32> to vector<2x64xf32>
    %103 = math.tanh %101 : vector<2x64xf32>
    %104 = arith.mulf %102, %103 : vector<2x64xf32>
    %105 = vector.extract_strided_slice %5 {offsets = [10, 0], sizes = [2, 256], strides = [1, 1]} : vector<16x256xf32> to vector<2x256xf32>
    %106 = arith.truncf %104 : vector<2x64xf32> to vector<2x64xbf16>
    %cst_17 = arith.constant dense<0.000000e+00> : vector<2x256xf32>
    %107 = tpu.matmul %106, %6, %cst_17 {dimension_numbers = #tpu.dot_dimension_numbers<[1], [0], [0], [1], [0, 0, 1, 1], [], []>} : vector<2x64xbf16>, vector<64x256xbf16>, vector<2x256xf32> -> vector<2x256xf32>
    %108 = arith.addf %105, %107 : vector<2x256xf32>
    %109 = vector.extract_strided_slice %108 {offsets = [0, 0], sizes = [2, 192], strides = [1, 1]} : vector<2x256xf32> to vector<2x192xf32>
    %110 = arith.negf %109 : vector<2x192xf32>
    %111 = math.exp %110 : vector<2x192xf32>
    %cst_18 = arith.constant 1.000000e+00 : f32
    %112 = vector.broadcast %cst_18 : f32 to vector<2x192xf32>
    %113 = arith.addf %112, %111 : vector<2x192xf32>
    %114 = arith.divf %112, %113 : vector<2x192xf32>
    %115 = vector.extract_strided_slice %108 {offsets = [0, 192], sizes = [2, 64], strides = [1, 1]} : vector<2x256xf32> to vector<2x64xf32>
    %116 = math.tanh %115 : vector<2x64xf32>
    %117 = vector.extract_strided_slice %114 {offsets = [0, 64], sizes = [2, 64], strides = [1, 1]} : vector<2x192xf32> to vector<2x64xf32>
    %118 = arith.mulf %117, %101 : vector<2x64xf32>
    %119 = vector.extract_strided_slice %114 {offsets = [0, 0], sizes = [2, 64], strides = [1, 1]} : vector<2x192xf32> to vector<2x64xf32>
    %120 = arith.mulf %119, %116 : vector<2x64xf32>
    %121 = arith.addf %118, %120 : vector<2x64xf32>
    %122 = vector.extract_strided_slice %114 {offsets = [0, 128], sizes = [2, 64], strides = [1, 1]} : vector<2x192xf32> to vector<2x64xf32>
    %123 = math.tanh %121 : vector<2x64xf32>
    %124 = arith.mulf %122, %123 : vector<2x64xf32>
    %125 = vector.extract_strided_slice %5 {offsets = [12, 0], sizes = [2, 256], strides = [1, 1]} : vector<16x256xf32> to vector<2x256xf32>
    %126 = arith.truncf %124 : vector<2x64xf32> to vector<2x64xbf16>
    %cst_19 = arith.constant dense<0.000000e+00> : vector<2x256xf32>
    %127 = tpu.matmul %126, %6, %cst_19 {dimension_numbers = #tpu.dot_dimension_numbers<[1], [0], [0], [1], [0, 0, 1, 1], [], []>} : vector<2x64xbf16>, vector<64x256xbf16>, vector<2x256xf32> -> vector<2x256xf32>
    %128 = arith.addf %125, %127 : vector<2x256xf32>
    %129 = vector.extract_strided_slice %128 {offsets = [0, 0], sizes = [2, 192], strides = [1, 1]} : vector<2x256xf32> to vector<2x192xf32>
    %130 = arith.negf %129 : vector<2x192xf32>
    %131 = math.exp %130 : vector<2x192xf32>
    %cst_20 = arith.constant 1.000000e+00 : f32
    %132 = vector.broadcast %cst_20 : f32 to vector<2x192xf32>
    %133 = arith.addf %132, %131 : vector<2x192xf32>
    %134 = arith.divf %132, %133 : vector<2x192xf32>
    %135 = vector.extract_strided_slice %128 {offsets = [0, 192], sizes = [2, 64], strides = [1, 1]} : vector<2x256xf32> to vector<2x64xf32>
    %136 = math.tanh %135 : vector<2x64xf32>
    %137 = vector.extract_strided_slice %134 {offsets = [0, 64], sizes = [2, 64], strides = [1, 1]} : vector<2x192xf32> to vector<2x64xf32>
    %138 = arith.mulf %137, %121 : vector<2x64xf32>
    %139 = vector.extract_strided_slice %134 {offsets = [0, 0], sizes = [2, 64], strides = [1, 1]} : vector<2x192xf32> to vector<2x64xf32>
    %140 = arith.mulf %139, %136 : vector<2x64xf32>
    %141 = arith.addf %138, %140 : vector<2x64xf32>
    %142 = vector.extract_strided_slice %134 {offsets = [0, 128], sizes = [2, 64], strides = [1, 1]} : vector<2x192xf32> to vector<2x64xf32>
    %143 = math.tanh %141 : vector<2x64xf32>
    %144 = arith.mulf %142, %143 : vector<2x64xf32>
    %145 = vector.extract_strided_slice %5 {offsets = [14, 0], sizes = [2, 256], strides = [1, 1]} : vector<16x256xf32> to vector<2x256xf32>
    %146 = arith.truncf %144 : vector<2x64xf32> to vector<2x64xbf16>
    %cst_21 = arith.constant dense<0.000000e+00> : vector<2x256xf32>
    %147 = tpu.matmul %146, %6, %cst_21 {dimension_numbers = #tpu.dot_dimension_numbers<[1], [0], [0], [1], [0, 0, 1, 1], [], []>} : vector<2x64xbf16>, vector<64x256xbf16>, vector<2x256xf32> -> vector<2x256xf32>
    %148 = arith.addf %145, %147 : vector<2x256xf32>
    %149 = vector.extract_strided_slice %148 {offsets = [0, 0], sizes = [2, 192], strides = [1, 1]} : vector<2x256xf32> to vector<2x192xf32>
    %150 = arith.negf %149 : vector<2x192xf32>
    %151 = math.exp %150 : vector<2x192xf32>
    %cst_22 = arith.constant 1.000000e+00 : f32
    %152 = vector.broadcast %cst_22 : f32 to vector<2x192xf32>
    %153 = arith.addf %152, %151 : vector<2x192xf32>
    %154 = arith.divf %152, %153 : vector<2x192xf32>
    %155 = vector.extract_strided_slice %148 {offsets = [0, 192], sizes = [2, 64], strides = [1, 1]} : vector<2x256xf32> to vector<2x64xf32>
    %156 = math.tanh %155 : vector<2x64xf32>
    %157 = vector.extract_strided_slice %154 {offsets = [0, 64], sizes = [2, 64], strides = [1, 1]} : vector<2x192xf32> to vector<2x64xf32>
    %158 = arith.mulf %157, %141 : vector<2x64xf32>
    %159 = vector.extract_strided_slice %154 {offsets = [0, 0], sizes = [2, 64], strides = [1, 1]} : vector<2x192xf32> to vector<2x64xf32>
    %160 = arith.mulf %159, %156 : vector<2x64xf32>
    %161 = arith.addf %158, %160 : vector<2x64xf32>
    %162 = vector.extract_strided_slice %154 {offsets = [0, 128], sizes = [2, 64], strides = [1, 1]} : vector<2x192xf32> to vector<2x64xf32>
    %163 = math.tanh %161 : vector<2x64xf32>
    %164 = arith.mulf %162, %163 : vector<2x64xf32>
    %165 = vector.extract_strided_slice %24 {offsets = [0, 0], sizes = [2, 32], strides = [1, 1]} : vector<2x64xf32> to vector<2x32xf32>
    %166 = vector.extract_strided_slice %164 {offsets = [0, 32], sizes = [2, 32], strides = [1, 1]} : vector<2x64xf32> to vector<2x32xf32>
    %167 = tpu.concatenate %165, %166 in 1 : vector<2x32xf32>, vector<2x32xf32> -> vector<2x64xf32>
    %168 = vector.extract_strided_slice %44 {offsets = [0, 0], sizes = [2, 32], strides = [1, 1]} : vector<2x64xf32> to vector<2x32xf32>
    %169 = vector.extract_strided_slice %144 {offsets = [0, 32], sizes = [2, 32], strides = [1, 1]} : vector<2x64xf32> to vector<2x32xf32>
    %170 = tpu.concatenate %168, %169 in 1 : vector<2x32xf32>, vector<2x32xf32> -> vector<2x64xf32>
    %171 = vector.extract_strided_slice %64 {offsets = [0, 0], sizes = [2, 32], strides = [1, 1]} : vector<2x64xf32> to vector<2x32xf32>
    %172 = vector.extract_strided_slice %124 {offsets = [0, 32], sizes = [2, 32], strides = [1, 1]} : vector<2x64xf32> to vector<2x32xf32>
    %173 = tpu.concatenate %171, %172 in 1 : vector<2x32xf32>, vector<2x32xf32> -> vector<2x64xf32>
    %174 = vector.extract_strided_slice %84 {offsets = [0, 0], sizes = [2, 32], strides = [1, 1]} : vector<2x64xf32> to vector<2x32xf32>
    %175 = vector.extract_strided_slice %104 {offsets = [0, 32], sizes = [2, 32], strides = [1, 1]} : vector<2x64xf32> to vector<2x32xf32>
    %176 = tpu.concatenate %174, %175 in 1 : vector<2x32xf32>, vector<2x32xf32> -> vector<2x64xf32>
    %177 = vector.extract_strided_slice %104 {offsets = [0, 0], sizes = [2, 32], strides = [1, 1]} : vector<2x64xf32> to vector<2x32xf32>
    %178 = vector.extract_strided_slice %84 {offsets = [0, 32], sizes = [2, 32], strides = [1, 1]} : vector<2x64xf32> to vector<2x32xf32>
    %179 = tpu.concatenate %177, %178 in 1 : vector<2x32xf32>, vector<2x32xf32> -> vector<2x64xf32>
    %180 = vector.extract_strided_slice %124 {offsets = [0, 0], sizes = [2, 32], strides = [1, 1]} : vector<2x64xf32> to vector<2x32xf32>
    %181 = vector.extract_strided_slice %64 {offsets = [0, 32], sizes = [2, 32], strides = [1, 1]} : vector<2x64xf32> to vector<2x32xf32>
    %182 = tpu.concatenate %180, %181 in 1 : vector<2x32xf32>, vector<2x32xf32> -> vector<2x64xf32>
    %183 = vector.extract_strided_slice %144 {offsets = [0, 0], sizes = [2, 32], strides = [1, 1]} : vector<2x64xf32> to vector<2x32xf32>
    %184 = vector.extract_strided_slice %44 {offsets = [0, 32], sizes = [2, 32], strides = [1, 1]} : vector<2x64xf32> to vector<2x32xf32>
    %185 = tpu.concatenate %183, %184 in 1 : vector<2x32xf32>, vector<2x32xf32> -> vector<2x64xf32>
    %186 = vector.extract_strided_slice %164 {offsets = [0, 0], sizes = [2, 32], strides = [1, 1]} : vector<2x64xf32> to vector<2x32xf32>
    %187 = vector.extract_strided_slice %24 {offsets = [0, 32], sizes = [2, 32], strides = [1, 1]} : vector<2x64xf32> to vector<2x32xf32>
    %188 = tpu.concatenate %186, %187 in 1 : vector<2x32xf32>, vector<2x32xf32> -> vector<2x64xf32>
    %189 = tpu.concatenate %167, %170, %173, %176, %179, %182, %185, %188 in 0 : vector<2x64xf32>, vector<2x64xf32>, vector<2x64xf32>, vector<2x64xf32>, vector<2x64xf32>, vector<2x64xf32>, vector<2x64xf32>, vector<2x64xf32> -> vector<16x64xf32>
    %190 = arith.truncf %189 : vector<16x64xf32> to vector<16x64xbf16>
    %c0_23 = arith.constant 0 : index
    %c0_24 = arith.constant 0 : index
    %191 = vector.load %arg4[%c0_23, %c0_24] : memref<64x16xbf16, #tpu.memory_space<vmem>>, vector<64x16xbf16>
    %cst_25 = arith.constant dense<0.000000e+00> : vector<16x16xf32>
    %192 = tpu.matmul %190, %191, %cst_25 {dimension_numbers = #tpu.dot_dimension_numbers<[1], [0], [0], [1], [0, 0, 1, 1], [], []>} : vector<16x64xbf16>, vector<64x16xbf16>, vector<16x16xf32> -> vector<16x16xf32>
    %c0_26 = arith.constant 0 : index
    %c0_27 = arith.constant 0 : index
    %193 = vector.load %arg5[%c0_26, %c0_27] : memref<1x16xf32, #tpu.memory_space<vmem>>, vector<1x16xf32>
    %194 = vector.broadcast %193 : vector<1x16xf32> to vector<16x16xf32>
    %195 = arith.addf %192, %194 : vector<16x16xf32>
    %cst_28 = arith.constant 0.000000e+00 : f32
    %196 = vector.broadcast %cst_28 : f32 to vector<16x16xf32>
    %197 = arith.maximumf %195, %196 : vector<16x16xf32>
    %198 = arith.truncf %197 : vector<16x16xf32> to vector<16x16xbf16>
    %c0_29 = arith.constant 0 : index
    %c0_30 = arith.constant 0 : index
    %199 = vector.load %arg6[%c0_29, %c0_30] : memref<16x16xbf16, #tpu.memory_space<vmem>>, vector<16x16xbf16>
    %cst_31 = arith.constant dense<0.000000e+00> : vector<16x16xf32>
    %200 = tpu.matmul %198, %199, %cst_31 {dimension_numbers = #tpu.dot_dimension_numbers<[1], [0], [0], [1], [0, 0, 1, 1], [], []>} : vector<16x16xbf16>, vector<16x16xbf16>, vector<16x16xf32> -> vector<16x16xf32>
    %c0_32 = arith.constant 0 : index
    %c0_33 = arith.constant 0 : index
    %201 = vector.load %arg7[%c0_32, %c0_33] : memref<1x16xf32, #tpu.memory_space<vmem>>, vector<1x16xf32>
    %202 = vector.broadcast %201 : vector<1x16xf32> to vector<16x16xf32>
    %203 = arith.addf %200, %202 : vector<16x16xf32>
    %cst_34 = arith.constant 0.000000e+00 : f32
    %204 = vector.broadcast %cst_34 : f32 to vector<2x16xf32>
    %205 = tpu.concatenate %204, %203, %204 in 0 : vector<2x16xf32>, vector<16x16xf32>, vector<2x16xf32> -> vector<20x16xf32>
    %206 = vector.extract_strided_slice %205 {offsets = [0, 0], sizes = [16, 16], strides = [1, 1]} : vector<20x16xf32> to vector<16x16xf32>
    %207 = vector.extract_strided_slice %205 {offsets = [2, 0], sizes = [16, 16], strides = [1, 1]} : vector<20x16xf32> to vector<16x16xf32>
    %208 = vector.extract_strided_slice %205 {offsets = [4, 0], sizes = [16, 16], strides = [1, 1]} : vector<20x16xf32> to vector<16x16xf32>
    %209 = tpu.concatenate %206, %207, %208 in 1 : vector<16x16xf32>, vector<16x16xf32>, vector<16x16xf32> -> vector<16x48xf32>
    %210 = arith.truncf %209 : vector<16x48xf32> to vector<16x48xbf16>
    %c0_35 = arith.constant 0 : index
    %c0_36 = arith.constant 0 : index
    %211 = vector.load %arg8[%c0_35, %c0_36] : memref<48x16xbf16, #tpu.memory_space<vmem>>, vector<48x16xbf16>
    %cst_37 = arith.constant dense<0.000000e+00> : vector<16x16xf32>
    %212 = tpu.matmul %210, %211, %cst_37 {dimension_numbers = #tpu.dot_dimension_numbers<[1], [0], [0], [1], [0, 0, 1, 1], [], []>} : vector<16x48xbf16>, vector<48x16xbf16>, vector<16x16xf32> -> vector<16x16xf32>
    %cst_38 = arith.constant 0.000000e+00 : f32
    %213 = vector.broadcast %cst_38 : f32 to vector<16x16xf32>
    %214 = arith.maximumf %212, %213 : vector<16x16xf32>
    %cst_39 = arith.constant 0.000000e+00 : f32
    %215 = vector.broadcast %cst_39 : f32 to vector<2x1xf32>
    %216 = vector.extract_strided_slice %214 {offsets = [0, 0], sizes = [4, 16], strides = [1, 1]} : vector<16x16xf32> to vector<4x16xf32>
    %217 = vector.extract_strided_slice %216 {offsets = [0, 0], sizes = [2, 16], strides = [1, 1]} : vector<4x16xf32> to vector<2x16xf32>
    %218 = vector.extract_strided_slice %216 {offsets = [2, 0], sizes = [2, 16], strides = [1, 1]} : vector<4x16xf32> to vector<2x16xf32>
    %219 = arith.maximumf %217, %218 : vector<2x16xf32>
    %c0_40 = arith.constant 0 : index
    %c0_41 = arith.constant 0 : index
    %220 = vector.load %arg9[%c0_40, %c0_41] : memref<4x16xf32, #tpu.memory_space<vmem>>, vector<1x16xf32>
    %221 = vector.broadcast %220 : vector<1x16xf32> to vector<2x16xf32>
    %222 = arith.mulf %219, %221 : vector<2x16xf32>
    %cst_42 = arith.constant dense<0.000000e+00> : vector<2xf32>
    %223 = vector.multi_reduction <add>, %222, %cst_42 [1] : vector<2x16xf32> to vector<2xf32>
    %224 = vector.shape_cast %223 : vector<2xf32> to vector<2x1xf32>
    %225 = arith.addf %215, %224 : vector<2x1xf32>
    %226 = vector.extract_strided_slice %214 {offsets = [4, 0], sizes = [4, 16], strides = [1, 1]} : vector<16x16xf32> to vector<4x16xf32>
    %227 = vector.extract_strided_slice %226 {offsets = [0, 0], sizes = [2, 16], strides = [1, 1]} : vector<4x16xf32> to vector<2x16xf32>
    %228 = vector.extract_strided_slice %226 {offsets = [2, 0], sizes = [2, 16], strides = [1, 1]} : vector<4x16xf32> to vector<2x16xf32>
    %229 = arith.maximumf %227, %228 : vector<2x16xf32>
    %c1 = arith.constant 1 : index
    %c0_43 = arith.constant 0 : index
    %230 = vector.load %arg9[%c1, %c0_43] : memref<4x16xf32, #tpu.memory_space<vmem>>, vector<1x16xf32>
    %231 = vector.broadcast %230 : vector<1x16xf32> to vector<2x16xf32>
    %232 = arith.mulf %229, %231 : vector<2x16xf32>
    %cst_44 = arith.constant dense<0.000000e+00> : vector<2xf32>
    %233 = vector.multi_reduction <add>, %232, %cst_44 [1] : vector<2x16xf32> to vector<2xf32>
    %234 = vector.shape_cast %233 : vector<2xf32> to vector<2x1xf32>
    %235 = arith.addf %225, %234 : vector<2x1xf32>
    %236 = vector.extract_strided_slice %214 {offsets = [8, 0], sizes = [4, 16], strides = [1, 1]} : vector<16x16xf32> to vector<4x16xf32>
    %237 = vector.extract_strided_slice %236 {offsets = [0, 0], sizes = [2, 16], strides = [1, 1]} : vector<4x16xf32> to vector<2x16xf32>
    %238 = vector.extract_strided_slice %236 {offsets = [2, 0], sizes = [2, 16], strides = [1, 1]} : vector<4x16xf32> to vector<2x16xf32>
    %239 = arith.maximumf %237, %238 : vector<2x16xf32>
    %c2 = arith.constant 2 : index
    %c0_45 = arith.constant 0 : index
    %240 = vector.load %arg9[%c2, %c0_45] : memref<4x16xf32, #tpu.memory_space<vmem>>, vector<1x16xf32>
    %241 = vector.broadcast %240 : vector<1x16xf32> to vector<2x16xf32>
    %242 = arith.mulf %239, %241 : vector<2x16xf32>
    %cst_46 = arith.constant dense<0.000000e+00> : vector<2xf32>
    %243 = vector.multi_reduction <add>, %242, %cst_46 [1] : vector<2x16xf32> to vector<2xf32>
    %244 = vector.shape_cast %243 : vector<2xf32> to vector<2x1xf32>
    %245 = arith.addf %235, %244 : vector<2x1xf32>
    %246 = vector.extract_strided_slice %214 {offsets = [12, 0], sizes = [4, 16], strides = [1, 1]} : vector<16x16xf32> to vector<4x16xf32>
    %247 = vector.extract_strided_slice %246 {offsets = [0, 0], sizes = [2, 16], strides = [1, 1]} : vector<4x16xf32> to vector<2x16xf32>
    %248 = vector.extract_strided_slice %246 {offsets = [2, 0], sizes = [2, 16], strides = [1, 1]} : vector<4x16xf32> to vector<2x16xf32>
    %249 = arith.maximumf %247, %248 : vector<2x16xf32>
    %c3 = arith.constant 3 : index
    %c0_47 = arith.constant 0 : index
    %250 = vector.load %arg9[%c3, %c0_47] : memref<4x16xf32, #tpu.memory_space<vmem>>, vector<1x16xf32>
    %251 = vector.broadcast %250 : vector<1x16xf32> to vector<2x16xf32>
    %252 = arith.mulf %249, %251 : vector<2x16xf32>
    %cst_48 = arith.constant dense<0.000000e+00> : vector<2xf32>
    %253 = vector.multi_reduction <add>, %252, %cst_48 [1] : vector<2x16xf32> to vector<2xf32>
    %254 = vector.shape_cast %253 : vector<2xf32> to vector<2x1xf32>
    %255 = arith.addf %245, %254 : vector<2x1xf32>
    %256 = arith.negf %255 : vector<2x1xf32>
    %257 = math.exp %256 : vector<2x1xf32>
    %cst_49 = arith.constant 1.000000e+00 : f32
    %258 = vector.broadcast %cst_49 : f32 to vector<2x1xf32>
    %259 = arith.addf %258, %257 : vector<2x1xf32>
    %260 = arith.divf %258, %259 : vector<2x1xf32>
    %c0_50 = arith.constant 0 : index
    %c0_51 = arith.constant 0 : index
    %261 = vector.load %arg10[%c0_50, %c0_51] : memref<2x1xf32, #tpu.memory_space<vmem>>, vector<2x1xf32>
    tpu.vector_store %arg10[%c0_50, %c0_51], %260 {strides = array<i32>} : memref<2x1xf32, #tpu.memory_space<vmem>>, vector<2x1xf32>,
    return
  }
}

</mosaic_0001>

<llo_original>
// kernel: forward.1
$region0: #{forward.1}
  #allocation0 [shape = 'u32[]', space=smem, size = 0x4, offset = 0x4, fixed_abs, tag = 'smem constant byte address 0x4 - core index']
  #allocation1 [shape = 'u32[144,128]{1,0:T(1,128)}', space=vmem, size = 0x12000, scoped, tag = 'internal scratch']
  %s0 = inlined_call_operand.vmem [shape: bf16[16,8], index: 0, kind: input, shape index: {}]
  %s1 = inlined_call_operand.vmem [shape: bf16[8,256], index: 1, kind: input, shape index: {}]
  %s2 = inlined_call_operand.vmem [shape: f32[1,256], index: 2, kind: input, shape index: {}]
  %s3 = inlined_call_operand.vmem [shape: bf16[64,256], index: 3, kind: input, shape index: {}]
  %s4 = inlined_call_operand.vmem [shape: bf16[64,16], index: 4, kind: input, shape index: {}]
  %s5 = inlined_call_operand.vmem [shape: f32[1,16], index: 5, kind: input, shape index: {}]
  %s6 = inlined_call_operand.vmem [shape: bf16[16,16], index: 6, kind: input, shape index: {}]
  %s7 = inlined_call_operand.vmem [shape: f32[1,16], index: 7, kind: input, shape index: {}]
  %s8 = inlined_call_operand.vmem [shape: bf16[48,16], index: 8, kind: input, shape index: {}]
  %s9 = inlined_call_operand.vmem [shape: f32[4,16], index: 9, kind: input, shape index: {}]
  %s10 = inlined_call_operand.vmem [shape: f32[2,1], index: 10, kind: output, shape index: {}]
  %s11 = sld [smem:[#allocation0]]
  $region50: #{forward.1} parent=0
    _
  %s13 = ssub.s32 1, %s11
  %s14 = scalar_select 0, %s13, %s11
  // Predicated region
  $region2: #{forward.1} parent=0 // pred_check
    _
  $region3: #{forward.1} parent=0 // pred_check_branch
    %16 = sbr.rel (0) target = $region5
  $region4: #{forward.1} parent=0 // pred_region
    _
  $region5: #{forward.1} parent=0 // pred_fallthru
    _
  // Predicated region
  $region6: #{forward.1} parent=0 // pred_check
    _
  $region7: #{forward.1} parent=0 // pred_check_branch
    %18 = sbr.rel (0) target = $region9
  $region8: #{forward.1} parent=0 // pred_region
    _
  $region9: #{forward.1} parent=0 // pred_fallthru
    _
  // Predicated region
  $region10: #{forward.1} parent=0 // pred_check
    _
  $region11: #{forward.1} parent=0 // pred_check_branch
    %20 = sbr.rel (0) target = $region13
  $region12: #{forward.1} parent=0 // pred_region
    _
  $region13: #{forward.1} parent=0 // pred_fallthru
    _
  // Predicated region
  $region14: #{forward.1} parent=0 // pred_check
    _
  $region15: #{forward.1} parent=0 // pred_check_branch
    %22 = sbr.rel (0) target = $region17
  $region16: #{forward.1} parent=0 // pred_region
    _
  $region17: #{forward.1} parent=0 // pred_fallthru
    _
  // Predicated region
  $region18: #{forward.1} parent=0 // pred_check
    _
  $region19: #{forward.1} parent=0 // pred_check_branch
    %24 = sbr.rel (0) target = $region21
  $region20: #{forward.1} parent=0 // pred_region
    _
  $region21: #{forward.1} parent=0 // pred_fallthru
    _
  // Predicated region
  $region22: #{forward.1} parent=0 // pred_check
    _
  $region23: #{forward.1} parent=0 // pred_check_branch
    %26 = sbr.rel (0) target = $region25
  $region24: #{forward.1} parent=0 // pred_region
    _
  $region25: #{forward.1} parent=0 // pred_fallthru
    _
  // Predicated region
  $region26: #{forward.1} parent=0 // pred_check
    _
  $region27: #{forward.1} parent=0 // pred_check_branch
    %28 = sbr.rel (0) target = $region29
  $region28: #{forward.1} parent=0 // pred_region
    _
  $region29: #{forward.1} parent=0 // pred_fallthru
    _
  // Predicated region
  $region30: #{forward.1} parent=0 // pred_check
    _
  $region31: #{forward.1} parent=0 // pred_check_branch
    %30 = sbr.rel (0) target = $region33
  $region32: #{forward.1} parent=0 // pred_region
    _
  $region33: #{forward.1} parent=0 // pred_fallthru
    _
  // Predicated region
  $region34: #{forward.1} parent=0 // pred_check
    _
  $region35: #{forward.1} parent=0 // pred_check_branch
    %32 = sbr.rel (0) target = $region37
  $region36: #{forward.1} parent=0 // pred_region
    _
  $region37: #{forward.1} parent=0 // pred_fallthru
    _
  // Predicated region
  $region38: #{forward.1} parent=0 // pred_check
    _
  $region39: #{forward.1} parent=0 // pred_check_branch
    %34 = sbr.rel (0) target = $region41
  $region40: #{forward.1} parent=0 // pred_region
    _
  $region41: #{forward.1} parent=0 // pred_fallthru
    _
  %v36 = vld [vmem:[%s0] sm:$0xf]
  %v37 = vld [vmem:[%s0 + $0x4] sm:$0xf]
  %v38 = vld [vmem:[%s1] sm:$0xff]
  %v39 = vld [vmem:[%s2] sm:$0x3]
  %v41 = vlaneseq
  %v42 = vshrl.u32 %v41, 7
  %v43 = vsub.s32 0, %v42
  %v44 = vrot.slane %v39, %v43
  %v45 = vlaneseq
  %v46 = vshrl.u32 %v45, 7
  %v47 = vsub.s32 1, %v46
  %v48 = vrot.slane %v39, %v47
  %v53 = vunpack.c.l.b16 %v36
  %v54 = vunpack.c.l.b16 %v37
  %v55 = vpack.c.b16 %v54, %v53
  %v57 = vunpack.c.l.b16 %v38
  %v58 = vunpack.c.h.b16 %v38
  %v59 = vpack.c.b16 %v57, %v57
  %v60 = vpack.c.b16 %v58, %v58
  %vm61 = vcmask 64512
  %v63 = vsel %vm61, %v55, 0
  %vm65 = vcmask 1043456
  %v67 = vsel %vm65, %v59, 0
  %v70 = vsel %vm65, %v60, 0
  %72 = vmatprep.subr.bf16.mxu0 0
  %73 = vmatpush1.bf16.msra.mxu0 0
  %74 = vmatprep.subr.bf16.mxu0 0
  %75 = vmatpush1.bf16.msra.mxu0 0
  %76 = vmatprep.subr.bf16.mxu0 0
  %77 = vmatpush1.bf16.msra.mxu0 0
  %78 = vmatprep.subr.bf16.mxu0 0
  %79 = vmatpush1.bf16.msra.mxu0 0
  %80 = vmatprep.subr.bf16.mxu0 0
  %81 = vmatpush1.bf16.msra.mxu0 0
  %82 = vmatprep.subr.bf16.mxu0 0
  %83 = vmatpush1.bf16.msra.mxu0 0
  %84 = vmatprep.subr.bf16.mxu0 0
  %85 = vmatpush1.bf16.msra.mxu0 0
  %86 = vmatprep.subr.bf16.mxu0 %v70
  %87 = vmatpush1.bf16.msra.mxu0 %v67
  %88 = vmatprep.subr.bf16.mxu0 0
  %89 = vmatpush2.bf16.msra.mxu0 0
  %90 = vmatprep.subr.bf16.mxu0 0
  %91 = vmatpush2.bf16.msra.mxu0 0
  %92 = vmatprep.subr.bf16.mxu0 0
  %93 = vmatpush2.bf16.msra.mxu0 0
  %94 = vmatprep.subr.bf16.mxu0 0
  %95 = vmatpush2.bf16.msra.mxu0 0
  %96 = vmatprep.subr.bf16.mxu0 0
  %97 = vmatpush2.bf16.msra.mxu0 0
  %98 = vmatprep.subr.bf16.mxu0 0
  %99 = vmatpush2.bf16.msra.mxu0 0
  %100 = vmatprep.subr.bf16.mxu0 0
  %101 = vmatpush2.bf16.msra.mxu0 0
  %102 = vmatprep.subr.bf16.mxu0 0
  %103 = vmatpush2.bf16.msra.mxu0 0
  %104 = vmatprep.mubr.bf16.mxu0 0
  %105 = vmatmul.mubr.bf16.gmra.mxu0 %v63
  %v106 = vpop.f32.mrf.mxu0
  %v107 = vadd.f32 %v44, %v106
  %v108 = vpop.f32.mrf.mxu0
  %v109 = vadd.f32 %v48, %v108
  %v110 = vpop.f32.mrf.mxu0
  %v111 = vadd.f32 %v44, %v110
  %v112 = vpop.f32.mrf.mxu0
  %v113 = vadd.f32 %v48, %v112
  %114 = vdwg.mxu0
  %v115 = vld [vmem:[%s3] sm:$0xff]
  %v116 = vld [vmem:[%s3 + $0x8] sm:$0xff]
  %v117 = vld [vmem:[%s3 + $0x10] sm:$0xff]
  %v118 = vld [vmem:[%s3 + $0x18] sm:$0xff]
  %v119 = vld [vmem:[%s3 + $0x20] sm:$0xff]
  %v120 = vld [vmem:[%s3 + $0x28] sm:$0xff]
  %v121 = vld [vmem:[%s3 + $0x30] sm:$0xff]
  %v122 = vld [vmem:[%s3 + $0x38] sm:$0xff]
  %v123 = vxor.u32 %v107, 2147483648
  %v124 = vxor.u32 %v109, 2147483648
  %v125 = vmul.f32 %v123, 1.442695
  %v126 = vpow.pop %v125
  %v127 = vmul.f32 %v124, 1.442695
  %v128 = vpow.pop %v127
  %v129 = vadd.f32 %v126, 1.0
  %v130 = vadd.f32 %v128, 1.0
  %v131 = vrcp.pop %v129
  %v132 = vmul.f32 1.0, %v131
  %v133 = vrcp.pop %v130
  %v134 = vmul.f32 1.0, %v133
  %v135 = vtanh.pop %v109
  %v136 = vmul.f32 %v132, 0.0
  %138 = vrot.lane.b32.xlu0 %v135, 64
  %v139 = vpop.permute.xlu0 %138
  %v141 = vmul.f32 %v132, %v139
  %143 = vrot.lane.b32.xlu0 %v141, 64
  %v144 = vpop.permute.xlu0 %143
  %v146 = vadd.f32 %v136, %v144
  %v147 = vtanh.pop %v146
  %149 = vrot.lane.b32.xlu0 %v147, 64
  %v150 = vpop.permute.xlu0 %149
  %v152 = vmul.f32 %v134, %v150
  %v153 = vpack.c.bf16 %v152, %v152
  %v162 = vunpack.c.l.b16 %v115
  %v163 = vunpack.c.h.b16 %v115
  %v164 = vunpack.c.l.b16 %v116
  %v165 = vunpack.c.h.b16 %v116
  %v166 = vunpack.c.l.b16 %v117
  %v167 = vunpack.c.h.b16 %v117
  %v168 = vunpack.c.l.b16 %v118
  %v169 = vunpack.c.h.b16 %v118
  %v170 = vunpack.c.l.b16 %v119
  %v171 = vunpack.c.h.b16 %v119
  %v172 = vunpack.c.l.b16 %v120
  %v173 = vunpack.c.h.b16 %v120
  %v174 = vunpack.c.l.b16 %v121
  %v175 = vunpack.c.h.b16 %v121
  %v176 = vunpack.c.l.b16 %v122
  %v177 = vunpack.c.h.b16 %v122
  %v178 = vpack.c.b16 %v164, %v162
  %v179 = vpack.c.b16 %v165, %v163
  %v180 = vpack.c.b16 %v168, %v166
  %v181 = vpack.c.b16 %v169, %v167
  %v182 = vpack.c.b16 %v172, %v170
  %v183 = vpack.c.b16 %v173, %v171
  %v184 = vpack.c.b16 %v176, %v174
  %v185 = vpack.c.b16 %v177, %v175
  %vm194 = vcmask 523264
  %v196 = vsel %vm194, %v153, 0
  %198 = vmatprep.subr.bf16.mxu0 0
  %199 = vmatpush1.bf16.msra.mxu0 0
  %200 = vmatprep.subr.bf16.mxu0 0
  %201 = vmatpush1.bf16.msra.mxu0 0
  %202 = vmatprep.subr.bf16.mxu0 0
  %203 = vmatpush1.bf16.msra.mxu0 0
  %204 = vmatprep.subr.bf16.mxu0 0
  %205 = vmatpush1.bf16.msra.mxu0 0
  %206 = vmatprep.subr.bf16.mxu0 %v185
  %207 = vmatpush1.bf16.msra.mxu0 %v184
  %208 = vmatprep.subr.bf16.mxu0 %v183
  %209 = vmatpush1.bf16.msra.mxu0 %v182
  %210 = vmatprep.subr.bf16.mxu0 %v181
  %211 = vmatpush1.bf16.msra.mxu0 %v180
  %212 = vmatprep.subr.bf16.mxu0 %v179
  %213 = vmatpush1.bf16.msra.mxu0 %v178
  %214 = vmatprep.subr.bf16.mxu0 0
  %215 = vmatpush2.bf16.msra.mxu0 0
  %216 = vmatprep.subr.bf16.mxu0 0
  %217 = vmatpush2.bf16.msra.mxu0 0
  %218 = vmatprep.subr.bf16.mxu0 0
  %219 = vmatpush2.bf16.msra.mxu0 0
  %220 = vmatprep.subr.bf16.mxu0 0
  %221 = vmatpush2.bf16.msra.mxu0 0
  %222 = vmatprep.subr.bf16.mxu0 0
  %223 = vmatpush2.bf16.msra.mxu0 0
  %224 = vmatprep.subr.bf16.mxu0 0
  %225 = vmatpush2.bf16.msra.mxu0 0
  %226 = vmatprep.subr.bf16.mxu0 0
  %227 = vmatpush2.bf16.msra.mxu0 0
  %228 = vmatprep.subr.bf16.mxu0 0
  %229 = vmatpush2.bf16.msra.mxu0 0
  %230 = vmatprep.mubr.bf16.mxu0 0
  %231 = vmatmul.mubr.bf16.gmra.mxu0 %v196
  %v232 = vpop.f32.mrf.mxu0
  %v233 = vadd.f32 0.0, %v232
  %v234 = vpop.f32.mrf.mxu0
  %v235 = vadd.f32 0.0, %v234
  %v236 = vpop.f32.mrf.mxu0
  %v237 = vpop.f32.mrf.mxu0
  %238 = vdwg.mxu0
  %v241 = vrot.slane %v233, 6
  %v242 = vrot.slane %v235, 6
  %v245 = vadd.f32 %v107, %v241
  %v246 = vadd.f32 %v109, %v242
  %v247 = vxor.u32 %v245, 2147483648
  %v248 = vxor.u32 %v246, 2147483648
  %v249 = vmul.f32 %v247, 1.442695
  %v250 = vpow.pop %v249
  %v251 = vmul.f32 %v248, 1.442695
  %v252 = vpow.pop %v251
  %v253 = vadd.f32 %v250, 1.0
  %v254 = vadd.f32 %v252, 1.0
  %v255 = vrcp.pop %v253
  %v256 = vmul.f32 1.0, %v255
  %v257 = vrcp.pop %v254
  %v258 = vmul.f32 1.0, %v257
  %v259 = vtanh.pop %v246
  %v261 = vrot.slane %v146, 6
  %v263 = vmul.f32 %v256, %v261
  %265 = vrot.lane.b32.xlu0 %v259, 64
  %v266 = vpop.permute.xlu0 %265
  %v268 = vmul.f32 %v256, %v266
  %270 = vrot.lane.b32.xlu0 %v268, 64
  %v271 = vpop.permute.xlu0 %270
  %v273 = vadd.f32 %v263, %v271
  %v274 = vtanh.pop %v273
  %276 = vrot.lane.b32.xlu0 %v274, 64
  %v277 = vpop.permute.xlu0 %276
  %v279 = vmul.f32 %v258, %v277
  %v280 = vpack.c.bf16 %v279, %v279
  %v282 = vrot.slane %v280, 1
  %v284 = vsel %vm194, %v282, 0
  %286 = vmatprep.subr.bf16.mxu0 0
  %287 = vmatpush1.bf16.msra.mxu0 0
  %288 = vmatprep.subr.bf16.mxu0 0
  %289 = vmatpush1.bf16.msra.mxu0 0
  %290 = vmatprep.subr.bf16.mxu0 0
  %291 = vmatpush1.bf16.msra.mxu0 0
  %292 = vmatprep.subr.bf16.mxu0 0
  %293 = vmatpush1.bf16.msra.mxu0 0
  %294 = vmatprep.subr.bf16.mxu0 %v185
  %295 = vmatpush1.bf16.msra.mxu0 %v184
  %296 = vmatprep.subr.bf16.mxu0 %v183
  %297 = vmatpush1.bf16.msra.mxu0 %v182
  %298 = vmatprep.subr.bf16.mxu0 %v181
  %299 = vmatpush1.bf16.msra.mxu0 %v180
  %300 = vmatprep.subr.bf16.mxu0 %v179
  %301 = vmatpush1.bf16.msra.mxu0 %v178
  %302 = vmatprep.subr.bf16.mxu0 0
  %303 = vmatpush2.bf16.msra.mxu0 0
  %304 = vmatprep.subr.bf16.mxu0 0
  %305 = vmatpush2.bf16.msra.mxu0 0
  %306 = vmatprep.subr.bf16.mxu0 0
  %307 = vmatpush2.bf16.msra.mxu0 0
  %308 = vmatprep.subr.bf16.mxu0 0
  %309 = vmatpush2.bf16.msra.mxu0 0
  %310 = vmatprep.subr.bf16.mxu0 0
  %311 = vmatpush2.bf16.msra.mxu0 0
  %312 = vmatprep.subr.bf16.mxu0 0
  %313 = vmatpush2.bf16.msra.mxu0 0
  %314 = vmatprep.subr.bf16.mxu0 0
  %315 = vmatpush2.bf16.msra.mxu0 0
  %316 = vmatprep.subr.bf16.mxu0 0
  %317 = vmatpush2.bf16.msra.mxu0 0
  %318 = vmatprep.mubr.bf16.mxu0 0
  %319 = vmatmul.mubr.bf16.gmra.mxu0 %v284
  %v320 = vpop.f32.mrf.mxu0
  %v321 = vadd.f32 0.0, %v320
  %v322 = vpop.f32.mrf.mxu0
  %v323 = vadd.f32 0.0, %v322
  %v324 = vpop.f32.mrf.mxu0
  %v325 = vpop.f32.mrf.mxu0
  %326 = vdwg.mxu0
  %v329 = vrot.slane %v321, 4
  %v330 = vrot.slane %v323, 4
  %v333 = vadd.f32 %v107, %v329
  %v334 = vadd.f32 %v109, %v330
  %v335 = vxor.u32 %v333, 2147483648
  %v336 = vxor.u32 %v334, 2147483648
  %v337 = vmul.f32 %v335, 1.442695
  %v338 = vpow.pop %v337
  %v339 = vmul.f32 %v336, 1.442695
  %v340 = vpow.pop %v339
  %v341 = vadd.f32 %v338, 1.0
  %v342 = vadd.f32 %v340, 1.0
  %v343 = vrcp.pop %v341
  %v344 = vmul.f32 1.0, %v343
  %v345 = vrcp.pop %v342
  %v346 = vmul.f32 1.0, %v345
  %v347 = vtanh.pop %v334
  %v349 = vrot.slane %v273, 6
  %v351 = vmul.f32 %v344, %v349
  %353 = vrot.lane.b32.xlu0 %v347, 64
  %v354 = vpop.permute.xlu0 %353
  %v356 = vmul.f32 %v344, %v354
  %358 = vrot.lane.b32.xlu0 %v356, 64
  %v359 = vpop.permute.xlu0 %358
  %v361 = vadd.f32 %v351, %v359
  %v362 = vtanh.pop %v361
  %364 = vrot.lane.b32.xlu0 %v362, 64
  %v365 = vpop.permute.xlu0 %364
  %v367 = vmul.f32 %v346, %v365
  %v368 = vpack.c.bf16 %v367, %v367
  %v370 = vrot.slane %v368, 2
  %v372 = vsel %vm194, %v370, 0
  %374 = vmatprep.subr.bf16.mxu0 0
  %375 = vmatpush1.bf16.msra.mxu0 0
  %376 = vmatprep.subr.bf16.mxu0 0
  %377 = vmatpush1.bf16.msra.mxu0 0
  %378 = vmatprep.subr.bf16.mxu0 0
  %379 = vmatpush1.bf16.msra.mxu0 0
  %380 = vmatprep.subr.bf16.mxu0 0
  %381 = vmatpush1.bf16.msra.mxu0 0
  %382 = vmatprep.subr.bf16.mxu0 %v185
  %383 = vmatpush1.bf16.msra.mxu0 %v184
  %384 = vmatprep.subr.bf16.mxu0 %v183
  %385 = vmatpush1.bf16.msra.mxu0 %v182
  %386 = vmatprep.subr.bf16.mxu0 %v181
  %387 = vmatpush1.bf16.msra.mxu0 %v180
  %388 = vmatprep.subr.bf16.mxu0 %v179
  %389 = vmatpush1.bf16.msra.mxu0 %v178
  %390 = vmatprep.subr.bf16.mxu0 0
  %391 = vmatpush2.bf16.msra.mxu0 0
  %392 = vmatprep.subr.bf16.mxu0 0
  %393 = vmatpush2.bf16.msra.mxu0 0
  %394 = vmatprep.subr.bf16.mxu0 0
  %395 = vmatpush2.bf16.msra.mxu0 0
  %396 = vmatprep.subr.bf16.mxu0 0
  %397 = vmatpush2.bf16.msra.mxu0 0
  %398 = vmatprep.subr.bf16.mxu0 0
  %399 = vmatpush2.bf16.msra.mxu0 0
  %400 = vmatprep.subr.bf16.mxu0 0
  %401 = vmatpush2.bf16.msra.mxu0 0
  %402 = vmatprep.subr.bf16.mxu0 0
  %403 = vmatpush2.bf16.msra.mxu0 0
  %404 = vmatprep.subr.bf16.mxu0 0
  %405 = vmatpush2.bf16.msra.mxu0 0
  %406 = vmatprep.mubr.bf16.mxu0 0
  %407 = vmatmul.mubr.bf16.gmra.mxu0 %v372
  %v408 = vpop.f32.mrf.mxu0
  %v409 = vadd.f32 0.0, %v408
  %v410 = vpop.f32.mrf.mxu0
  %v411 = vadd.f32 0.0, %v410
  %v412 = vpop.f32.mrf.mxu0
  %v413 = vpop.f32.mrf.mxu0
  %414 = vdwg.mxu0
  %v417 = vrot.slane %v409, 2
  %v418 = vrot.slane %v411, 2
  %v421 = vadd.f32 %v107, %v417
  %v422 = vadd.f32 %v109, %v418
  %v423 = vxor.u32 %v421, 2147483648
  %v424 = vxor.u32 %v422, 2147483648
  %v425 = vmul.f32 %v423, 1.442695
  %v426 = vpow.pop %v425
  %v427 = vmul.f32 %v424, 1.442695
  %v428 = vpow.pop %v427
  %v429 = vadd.f32 %v426, 1.0
  %v430 = vadd.f32 %v428, 1.0
  %v431 = vrcp.pop %v429
  %v432 = vmul.f32 1.0, %v431
  %v433 = vrcp.pop %v430
  %v434 = vmul.f32 1.0, %v433
  %v435 = vtanh.pop %v422
  %v437 = vrot.slane %v361, 6
  %v439 = vmul.f32 %v432, %v437
  %441 = vrot.lane.b32.xlu0 %v435, 64
  %v442 = vpop.permute.xlu0 %441
  %v444 = vmul.f32 %v432, %v442
  %446 = vrot.lane.b32.xlu0 %v444, 64
  %v447 = vpop.permute.xlu0 %446
  %v449 = vadd.f32 %v439, %v447
  %v450 = vtanh.pop %v449
  %452 = vrot.lane.b32.xlu0 %v450, 64
  %v453 = vpop.permute.xlu0 %452
  %v455 = vmul.f32 %v434, %v453
  %v456 = vpack.c.bf16 %v455, %v455
  %v458 = vrot.slane %v456, 3
  %v460 = vsel %vm194, %v458, 0
  %462 = vmatprep.subr.bf16.mxu0 0
  %463 = vmatpush1.bf16.msra.mxu0 0
  %464 = vmatprep.subr.bf16.mxu0 0
  %465 = vmatpush1.bf16.msra.mxu0 0
  %466 = vmatprep.subr.bf16.mxu0 0
  %467 = vmatpush1.bf16.msra.mxu0 0
  %468 = vmatprep.subr.bf16.mxu0 0
  %469 = vmatpush1.bf16.msra.mxu0 0
  %470 = vmatprep.subr.bf16.mxu0 %v185
  %471 = vmatpush1.bf16.msra.mxu0 %v184
  %472 = vmatprep.subr.bf16.mxu0 %v183
  %473 = vmatpush1.bf16.msra.mxu0 %v182
  %474 = vmatprep.subr.bf16.mxu0 %v181
  %475 = vmatpush1.bf16.msra.mxu0 %v180
  %476 = vmatprep.subr.bf16.mxu0 %v179
  %477 = vmatpush1.bf16.msra.mxu0 %v178
  %478 = vmatprep.subr.bf16.mxu0 0
  %479 = vmatpush2.bf16.msra.mxu0 0
  %480 = vmatprep.subr.bf16.mxu0 0
  %481 = vmatpush2.bf16.msra.mxu0 0
  %482 = vmatprep.subr.bf16.mxu0 0
  %483 = vmatpush2.bf16.msra.mxu0 0
  %484 = vmatprep.subr.bf16.mxu0 0
  %485 = vmatpush2.bf16.msra.mxu0 0
  %486 = vmatprep.subr.bf16.mxu0 0
  %487 = vmatpush2.bf16.msra.mxu0 0
  %488 = vmatprep.subr.bf16.mxu0 0
  %489 = vmatpush2.bf16.msra.mxu0 0
  %490 = vmatprep.subr.bf16.mxu0 0
  %491 = vmatpush2.bf16.msra.mxu0 0
  %492 = vmatprep.subr.bf16.mxu0 0
  %493 = vmatpush2.bf16.msra.mxu0 0
  %494 = vmatprep.mubr.bf16.mxu0 0
  %495 = vmatmul.mubr.bf16.gmra.mxu0 %v460
  %v496 = vpop.f32.mrf.mxu0
  %v497 = vadd.f32 0.0, %v496
  %v498 = vpop.f32.mrf.mxu0
  %v499 = vadd.f32 0.0, %v498
  %v500 = vpop.f32.mrf.mxu0
  %v501 = vpop.f32.mrf.mxu0
  %502 = vdwg.mxu0
  %v503 = vadd.f32 %v111, %v497
  %v504 = vadd.f32 %v113, %v499
  %v505 = vxor.u32 %v503, 2147483648
  %v506 = vxor.u32 %v504, 2147483648
  %v507 = vmul.f32 %v505, 1.442695
  %v508 = vpow.pop %v507
  %v509 = vmul.f32 %v506, 1.442695
  %v510 = vpow.pop %v509
  %v511 = vadd.f32 %v508, 1.0
  %v512 = vadd.f32 %v510, 1.0
  %v513 = vrcp.pop %v511
  %v514 = vmul.f32 1.0, %v513
  %v515 = vrcp.pop %v512
  %v516 = vmul.f32 1.0, %v515
  %v517 = vtanh.pop %v504
  %v519 = vrot.slane %v449, 6
  %v521 = vmul.f32 %v514, %v519
  %523 = vrot.lane.b32.xlu0 %v517, 64
  %v524 = vpop.permute.xlu0 %523
  %v526 = vmul.f32 %v514, %v524
  %528 = vrot.lane.b32.xlu0 %v526, 64
  %v529 = vpop.permute.xlu0 %528
  %v531 = vadd.f32 %v521, %v529
  %v532 = vtanh.pop %v531
  %534 = vrot.lane.b32.xlu0 %v532, 64
  %v535 = vpop.permute.xlu0 %534
  %v537 = vmul.f32 %v516, %v535
  %v538 = vpack.c.bf16 %v537, %v537
  %v540 = vsel %vm194, %v538, 0
  %542 = vmatprep.subr.bf16.mxu0 0
  %543 = vmatpush1.bf16.msra.mxu0 0
  %544 = vmatprep.subr.bf16.mxu0 0
  %545 = vmatpush1.bf16.msra.mxu0 0
  %546 = vmatprep.subr.bf16.mxu0 0
  %547 = vmatpush1.bf16.msra.mxu0 0
  %548 = vmatprep.subr.bf16.mxu0 0
  %549 = vmatpush1.bf16.msra.mxu0 0
  %550 = vmatprep.subr.bf16.mxu0 %v185
  %551 = vmatpush1.bf16.msra.mxu0 %v184
  %552 = vmatprep.subr.bf16.mxu0 %v183
  %553 = vmatpush1.bf16.msra.mxu0 %v182
  %554 = vmatprep.subr.bf16.mxu0 %v181
  %555 = vmatpush1.bf16.msra.mxu0 %v180
  %556 = vmatprep.subr.bf16.mxu0 %v179
  %557 = vmatpush1.bf16.msra.mxu0 %v178
  %558 = vmatprep.subr.bf16.mxu0 0
  %559 = vmatpush2.bf16.msra.mxu0 0
  %560 = vmatprep.subr.bf16.mxu0 0
  %561 = vmatpush2.bf16.msra.mxu0 0
  %562 = vmatprep.subr.bf16.mxu0 0
  %563 = vmatpush2.bf16.msra.mxu0 0
  %564 = vmatprep.subr.bf16.mxu0 0
  %565 = vmatpush2.bf16.msra.mxu0 0
  %566 = vmatprep.subr.bf16.mxu0 0
  %567 = vmatpush2.bf16.msra.mxu0 0
  %568 = vmatprep.subr.bf16.mxu0 0
  %569 = vmatpush2.bf16.msra.mxu0 0
  %570 = vmatprep.subr.bf16.mxu0 0
  %571 = vmatpush2.bf16.msra.mxu0 0
  %572 = vmatprep.subr.bf16.mxu0 0
  %573 = vmatpush2.bf16.msra.mxu0 0
  %574 = vmatprep.mubr.bf16.mxu0 0
  %575 = vmatmul.mubr.bf16.gmra.mxu0 %v540
  %v576 = vpop.f32.mrf.mxu0
  %v577 = vadd.f32 0.0, %v576
  %v578 = vpop.f32.mrf.mxu0
  %v579 = vadd.f32 0.0, %v578
  %v580 = vpop.f32.mrf.mxu0
  %v581 = vpop.f32.mrf.mxu0
  %582 = vdwg.mxu0
  %v585 = vrot.slane %v577, 6
  %v586 = vrot.slane %v579, 6
  %v589 = vadd.f32 %v111, %v585
  %v590 = vadd.f32 %v113, %v586
  %v591 = vxor.u32 %v589, 2147483648
  %v592 = vxor.u32 %v590, 2147483648
  %v593 = vmul.f32 %v591, 1.442695
  %v594 = vpow.pop %v593
  %v595 = vmul.f32 %v592, 1.442695
  %v596 = vpow.pop %v595
  %v597 = vadd.f32 %v594, 1.0
  %v598 = vadd.f32 %v596, 1.0
  %v599 = vrcp.pop %v597
  %v600 = vmul.f32 1.0, %v599
  %v601 = vrcp.pop %v598
  %v602 = vmul.f32 1.0, %v601
  %v603 = vtanh.pop %v590
  %v605 = vrot.slane %v531, 6
  %v607 = vmul.f32 %v600, %v605
  %609 = vrot.lane.b32.xlu0 %v603, 64
  %v610 = vpop.permute.xlu0 %609
  %v612 = vmul.f32 %v600, %v610
  %614 = vrot.lane.b32.xlu0 %v612, 64
  %v615 = vpop.permute.xlu0 %614
  %v617 = vadd.f32 %v607, %v615
  %v618 = vtanh.pop %v617
  %620 = vrot.lane.b32.xlu0 %v618, 64
  %v621 = vpop.permute.xlu0 %620
  %v623 = vmul.f32 %v602, %v621
  %v624 = vpack.c.bf16 %v623, %v623
  %v626 = vrot.slane %v624, 1
  %v628 = vsel %vm194, %v626, 0
  %630 = vmatprep.subr.bf16.mxu0 0
  %631 = vmatpush1.bf16.msra.mxu0 0
  %632 = vmatprep.subr.bf16.mxu0 0
  %633 = vmatpush1.bf16.msra.mxu0 0
  %634 = vmatprep.subr.bf16.mxu0 0
  %635 = vmatpush1.bf16.msra.mxu0 0
  %636 = vmatprep.subr.bf16.mxu0 0
  %637 = vmatpush1.bf16.msra.mxu0 0
  %638 = vmatprep.subr.bf16.mxu0 %v185
  %639 = vmatpush1.bf16.msra.mxu0 %v184
  %640 = vmatprep.subr.bf16.mxu0 %v183
  %641 = vmatpush1.bf16.msra.mxu0 %v182
  %642 = vmatprep.subr.bf16.mxu0 %v181
  %643 = vmatpush1.bf16.msra.mxu0 %v180
  %644 = vmatprep.subr.bf16.mxu0 %v179
  %645 = vmatpush1.bf16.msra.mxu0 %v178
  %646 = vmatprep.subr.bf16.mxu0 0
  %647 = vmatpush2.bf16.msra.mxu0 0
  %648 = vmatprep.subr.bf16.mxu0 0
  %649 = vmatpush2.bf16.msra.mxu0 0
  %650 = vmatprep.subr.bf16.mxu0 0
  %651 = vmatpush2.bf16.msra.mxu0 0
  %652 = vmatprep.subr.bf16.mxu0 0
  %653 = vmatpush2.bf16.msra.mxu0 0
  %654 = vmatprep.subr.bf16.mxu0 0
  %655 = vmatpush2.bf16.msra.mxu0 0
  %656 = vmatprep.subr.bf16.mxu0 0
  %657 = vmatpush2.bf16.msra.mxu0 0
  %658 = vmatprep.subr.bf16.mxu0 0
  %659 = vmatpush2.bf16.msra.mxu0 0
  %660 = vmatprep.subr.bf16.mxu0 0
  %661 = vmatpush2.bf16.msra.mxu0 0
  %662 = vmatprep.mubr.bf16.mxu0 0
  %663 = vmatmul.mubr.bf16.gmra.mxu0 %v628
  %v664 = vpop.f32.mrf.mxu0
  %v665 = vadd.f32 0.0, %v664
  %v666 = vpop.f32.mrf.mxu0
  %v667 = vadd.f32 0.0, %v666
  %v668 = vpop.f32.mrf.mxu0
  %v669 = vpop.f32.mrf.mxu0
  %670 = vdwg.mxu0
  %v673 = vrot.slane %v665, 4
  %v674 = vrot.slane %v667, 4
  %v677 = vadd.f32 %v111, %v673
  %v678 = vadd.f32 %v113, %v674
  %v679 = vxor.u32 %v677, 2147483648
  %v680 = vxor.u32 %v678, 2147483648
  %v681 = vmul.f32 %v679, 1.442695
  %v682 = vpow.pop %v681
  %v683 = vmul.f32 %v680, 1.442695
  %v684 = vpow.pop %v683
  %v685 = vadd.f32 %v682, 1.0
  %v686 = vadd.f32 %v684, 1.0
  %v687 = vrcp.pop %v685
  %v688 = vmul.f32 1.0, %v687
  %v689 = vrcp.pop %v686
  %v690 = vmul.f32 1.0, %v689
  %v691 = vtanh.pop %v678
  %v693 = vrot.slane %v617, 6
  %v695 = vmul.f32 %v688, %v693
  %697 = vrot.lane.b32.xlu0 %v691, 64
  %v698 = vpop.permute.xlu0 %697
  %v700 = vmul.f32 %v688, %v698
  %702 = vrot.lane.b32.xlu0 %v700, 64
  %v703 = vpop.permute.xlu0 %702
  %v705 = vadd.f32 %v695, %v703
  %v706 = vtanh.pop %v705
  %708 = vrot.lane.b32.xlu0 %v706, 64
  %v709 = vpop.permute.xlu0 %708
  %v711 = vmul.f32 %v690, %v709
  %v712 = vpack.c.bf16 %v711, %v711
  %v714 = vrot.slane %v712, 2
  %v716 = vsel %vm194, %v714, 0
  %718 = vmatprep.subr.bf16.mxu0 0
  %719 = vmatpush1.bf16.msra.mxu0 0
  %720 = vmatprep.subr.bf16.mxu0 0
  %721 = vmatpush1.bf16.msra.mxu0 0
  %722 = vmatprep.subr.bf16.mxu0 0
  %723 = vmatpush1.bf16.msra.mxu0 0
  %724 = vmatprep.subr.bf16.mxu0 0
  %725 = vmatpush1.bf16.msra.mxu0 0
  %726 = vmatprep.subr.bf16.mxu0 %v185
  %727 = vmatpush1.bf16.msra.mxu0 %v184
  %728 = vmatprep.subr.bf16.mxu0 %v183
  %729 = vmatpush1.bf16.msra.mxu0 %v182
  %730 = vmatprep.subr.bf16.mxu0 %v181
  %731 = vmatpush1.bf16.msra.mxu0 %v180
  %732 = vmatprep.subr.bf16.mxu0 %v179
  %733 = vmatpush1.bf16.msra.mxu0 %v178
  %734 = vmatprep.subr.bf16.mxu0 0
  %735 = vmatpush2.bf16.msra.mxu0 0
  %736 = vmatprep.subr.bf16.mxu0 0
  %737 = vmatpush2.bf16.msra.mxu0 0
  %738 = vmatprep.subr.bf16.mxu0 0
  %739 = vmatpush2.bf16.msra.mxu0 0
  %740 = vmatprep.subr.bf16.mxu0 0
  %741 = vmatpush2.bf16.msra.mxu0 0
  %742 = vmatprep.subr.bf16.mxu0 0
  %743 = vmatpush2.bf16.msra.mxu0 0
  %744 = vmatprep.subr.bf16.mxu0 0
  %745 = vmatpush2.bf16.msra.mxu0 0
  %746 = vmatprep.subr.bf16.mxu0 0
  %747 = vmatpush2.bf16.msra.mxu0 0
  %748 = vmatprep.subr.bf16.mxu0 0
  %749 = vmatpush2.bf16.msra.mxu0 0
  %750 = vmatprep.mubr.bf16.mxu0 0
  %751 = vmatmul.mubr.bf16.gmra.mxu0 %v716
  %v752 = vpop.f32.mrf.mxu0
  %v753 = vadd.f32 0.0, %v752
  %v754 = vpop.f32.mrf.mxu0
  %v755 = vadd.f32 0.0, %v754
  %v756 = vpop.f32.mrf.mxu0
  %v757 = vpop.f32.mrf.mxu0
  %758 = vdwg.mxu0
  %v761 = vrot.slane %v753, 2
  %v762 = vrot.slane %v755, 2
  %v765 = vadd.f32 %v111, %v761
  %v766 = vadd.f32 %v113, %v762
  %v767 = vxor.u32 %v765, 2147483648
  %v768 = vxor.u32 %v766, 2147483648
  %v769 = vmul.f32 %v767, 1.442695
  %v770 = vpow.pop %v769
  %v771 = vmul.f32 %v768, 1.442695
  %v772 = vpow.pop %v771
  %v773 = vadd.f32 %v770, 1.0
  %v774 = vadd.f32 %v772, 1.0
  %v775 = vrcp.pop %v773
  %v776 = vmul.f32 1.0, %v775
  %v777 = vrcp.pop %v774
  %v778 = vmul.f32 1.0, %v777
  %v779 = vtanh.pop %v766
  %v781 = vrot.slane %v705, 6
  %v783 = vmul.f32 %v776, %v781
  %785 = vrot.lane.b32.xlu0 %v779, 64
  %v786 = vpop.permute.xlu0 %785
  %v788 = vmul.f32 %v776, %v786
  %790 = vrot.lane.b32.xlu0 %v788, 64
  %v791 = vpop.permute.xlu0 %790
  %v793 = vadd.f32 %v783, %v791
  %v794 = vtanh.pop %v793
  %796 = vrot.lane.b32.xlu0 %v794, 64
  %v797 = vpop.permute.xlu0 %796
  %v799 = vmul.f32 %v778, %v797
  %v801 = vrot.slane %v799, 6
  %vm803 = vcmask 261120
  %v804 = vsel %vm803, %v152, %v801
  %v806 = vrot.slane %v711, 2
  %v808 = vsel %vm803, %v279, %v806
  %v810 = vrot.slane %v623, 6
  %v812 = vsel %vm803, %v367, %v810
  %v814 = vrot.slane %v537, 2
  %v816 = vsel %vm803, %v455, %v814
  %v818 = vrot.slane %v455, 6
  %v820 = vsel %vm803, %v537, %v818
  %v822 = vrot.slane %v367, 2
  %v824 = vsel %vm803, %v623, %v822
  %v826 = vrot.slane %v279, 6
  %v828 = vsel %vm803, %v711, %v826
  %v830 = vrot.slane %v152, 2
  %v832 = vsel %vm803, %v799, %v830
  %vm833 = vcmask 1041408
  %v834 = vsel %vm833, %v804, %v808
  %v835 = vsel %vm65, %v834, %v812
  %vm836 = vcmask 1045504
  %v837 = vsel %vm836, %v835, %v816
  %v838 = vsel %vm833, %v820, %v824
  %v839 = vsel %vm65, %v838, %v828
  %v840 = vsel %vm836, %v839, %v832
  %v841 = vpack.c.bf16 %v840, %v837
  %v842 = vld [vmem:[%s4] sm:$0xf]
  %v843 = vld [vmem:[%s4 + $0x4] sm:$0xf]
  %v844 = vld [vmem:[%s4 + $0x8] sm:$0xf]
  %v845 = vld [vmem:[%s4 + $0xc] sm:$0xf]
  %v846 = vld [vmem:[%s4 + $0x10] sm:$0xf]
  %v847 = vld [vmem:[%s4 + $0x14] sm:$0xf]
  %v848 = vld [vmem:[%s4 + $0x18] sm:$0xf]
  %v849 = vld [vmem:[%s4 + $0x1c] sm:$0xf]
  %v850 = vld [vmem:[%s5] sm:$0x1]
  %v852 = vlaneseq
  %v853 = vshrl.u32 %v852, 7
  %v854 = vsub.s32 0, %v853
  %v855 = vrot.slane %v850, %v854
  %v865 = vunpack.c.l.b16 %v842
  %v866 = vunpack.c.l.b16 %v843
  %v867 = vunpack.c.l.b16 %v844
  %v868 = vunpack.c.l.b16 %v845
  %v869 = vunpack.c.l.b16 %v846
  %v870 = vunpack.c.l.b16 %v847
  %v871 = vunpack.c.l.b16 %v848
  %v872 = vunpack.c.l.b16 %v849
  %v873 = vpack.c.b16 %v866, %v865
  %v874 = vpack.c.b16 %v868, %v867
  %v875 = vpack.c.b16 %v870, %v869
  %v876 = vpack.c.b16 %v872, %v871
  %v882 = vsel %vm194, %v841, 0
  %884 = vmatprep.subr.bf16.mxu0 0
  %885 = vmatpush1.bf16.msra.mxu0 0
  %886 = vmatprep.subr.bf16.mxu0 0
  %887 = vmatpush1.bf16.msra.mxu0 0
  %888 = vmatprep.subr.bf16.mxu0 0
  %889 = vmatpush1.bf16.msra.mxu0 0
  %890 = vmatprep.subr.bf16.mxu0 0
  %891 = vmatpush1.bf16.msra.mxu0 0
  %892 = vmatprep.subr.bf16.mxu0 0
  %893 = vmatpush1.bf16.msra.mxu0 %v876
  %894 = vmatprep.subr.bf16.mxu0 0
  %895 = vmatpush1.bf16.msra.mxu0 %v875
  %896 = vmatprep.subr.bf16.mxu0 0
  %897 = vmatpush1.bf16.msra.mxu0 %v874
  %898 = vmatprep.subr.bf16.mxu0 0
  %899 = vmatpush1.bf16.msra.mxu0 %v873
  %900 = vmatprep.subr.bf16.mxu0 0
  %901 = vmatpush2.bf16.msra.mxu0 0
  %902 = vmatprep.subr.bf16.mxu0 0
  %903 = vmatpush2.bf16.msra.mxu0 0
  %904 = vmatprep.subr.bf16.mxu0 0
  %905 = vmatpush2.bf16.msra.mxu0 0
  %906 = vmatprep.subr.bf16.mxu0 0
  %907 = vmatpush2.bf16.msra.mxu0 0
  %908 = vmatprep.subr.bf16.mxu0 0
  %909 = vmatpush2.bf16.msra.mxu0 0
  %910 = vmatprep.subr.bf16.mxu0 0
  %911 = vmatpush2.bf16.msra.mxu0 0
  %912 = vmatprep.subr.bf16.mxu0 0
  %913 = vmatpush2.bf16.msra.mxu0 0
  %914 = vmatprep.subr.bf16.mxu0 0
  %915 = vmatpush2.bf16.msra.mxu0 0
  %916 = vmatprep.mubr.bf16.mxu0 0
  %917 = vmatmul.mubr.bf16.gmra.mxu0 %v882
  %v918 = vpop.f32.mrf.mxu0
  %v919 = vadd.f32 %v855, %v918
  %v920 = vpop.f32.mrf.mxu0
  %v921 = vpop.f32.mrf.mxu0
  %v922 = vadd.f32 %v855, %v921
  %v923 = vpop.f32.mrf.mxu0
  %924 = vdwg.mxu0
  %v925 = vmax.f32 %v919, 0.0
  %v926 = vmax.f32 %v922, 0.0
  %v927 = vpack.c.bf16 %v926, %v925
  %v928 = vld [vmem:[%s6] sm:$0xf]
  %v929 = vld [vmem:[%s6 + $0x4] sm:$0xf]
  %v930 = vld [vmem:[%s7] sm:$0x1]
  %v932 = vlaneseq
  %v933 = vshrl.u32 %v932, 7
  %v934 = vsub.s32 0, %v933
  %v935 = vrot.slane %v930, %v934
  %v939 = vunpack.c.l.b16 %v928
  %v940 = vunpack.c.l.b16 %v929
  %v941 = vpack.c.b16 %v940, %v939
  %vm943 = vcmask 130048
  %v945 = vsel %vm943, %v927, 0
  %947 = vmatprep.subr.bf16.mxu0 0
  %948 = vmatpush1.bf16.msra.mxu0 0
  %949 = vmatprep.subr.bf16.mxu0 0
  %950 = vmatpush1.bf16.msra.mxu0 0
  %951 = vmatprep.subr.bf16.mxu0 0
  %952 = vmatpush1.bf16.msra.mxu0 0
  %953 = vmatprep.subr.bf16.mxu0 0
  %954 = vmatpush1.bf16.msra.mxu0 0
  %955 = vmatprep.subr.bf16.mxu0 0
  %956 = vmatpush1.bf16.msra.mxu0 0
  %957 = vmatprep.subr.bf16.mxu0 0
  %958 = vmatpush1.bf16.msra.mxu0 0
  %959 = vmatprep.subr.bf16.mxu0 0
  %960 = vmatpush1.bf16.msra.mxu0 0
  %961 = vmatprep.subr.bf16.mxu0 0
  %962 = vmatpush1.bf16.msra.mxu0 %v941
  %963 = vmatprep.subr.bf16.mxu0 0
  %964 = vmatpush2.bf16.msra.mxu0 0
  %965 = vmatprep.subr.bf16.mxu0 0
  %966 = vmatpush2.bf16.msra.mxu0 0
  %967 = vmatprep.subr.bf16.mxu0 0
  %968 = vmatpush2.bf16.msra.mxu0 0
  %969 = vmatprep.subr.bf16.mxu0 0
  %970 = vmatpush2.bf16.msra.mxu0 0
  %971 = vmatprep.subr.bf16.mxu0 0
  %972 = vmatpush2.bf16.msra.mxu0 0
  %973 = vmatprep.subr.bf16.mxu0 0
  %974 = vmatpush2.bf16.msra.mxu0 0
  %975 = vmatprep.subr.bf16.mxu0 0
  %976 = vmatpush2.bf16.msra.mxu0 0
  %977 = vmatprep.subr.bf16.mxu0 0
  %978 = vmatpush2.bf16.msra.mxu0 0
  %979 = vmatprep.mubr.bf16.mxu0 0
  %980 = vmatmul.mubr.bf16.gmra.mxu0 %v945
  %v981 = vpop.f32.mrf.mxu0
  %v982 = vadd.f32 %v935, %v981
  %v983 = vpop.f32.mrf.mxu0
  %v984 = vpop.f32.mrf.mxu0
  %v985 = vadd.f32 %v935, %v984
  %v986 = vpop.f32.mrf.mxu0
  %987 = vdwg.mxu0
  %v990 = vrot.slane %v982, 6
  %v991 = vrot.slane %v985, 6
  %v992 = vsel %vm833, %v990, %v991
  %v996 = vsel %vm833, 0.0, %v990
  %v997 = vsel %vm833, %v991, 0.0
  %v1000 = vrot.slane %v996, 2
  %v1001 = vrot.slane %v992, 2
  %v1002 = vsel %vm836, %v1000, %v1001
  %v1003 = vrot.slane %v997, 2
  %v1004 = vsel %vm836, %v1001, %v1003
  %1005 = vrot.lane.b32.xlu0 %v1002, 16
  %v1006 = vpop.permute.xlu0 %1005
  %1007 = vrot.lane.b32.xlu0 %v1004, 16
  %v1008 = vpop.permute.xlu0 %1007
  %v1011 = vrot.slane %v996, 4
  %v1012 = vrot.slane %v992, 4
  %v1013 = vsel %vm65, %v1011, %v1012
  %v1014 = vrot.slane %v997, 4
  %v1015 = vsel %vm65, %v1012, %v1014
  %1016 = vrot.lane.b32.xlu0 %v1013, 32
  %v1017 = vpop.permute.xlu0 %1016
  %1018 = vrot.lane.b32.xlu0 %v1015, 32
  %v1019 = vpop.permute.xlu0 %1018
  %v1022 = vsel %vm943, %v996, %v1006
  %v1023 = vsel %vm943, %v992, %v1008
  %v1024 = vsel %vm803, %v1022, %v1017
  %v1025 = vsel %vm803, %v1023, %v1019
  %v1026 = vpack.c.bf16 %v1025, %v1024
  %v1027 = vld [vmem:[%s8] sm:$0xf]
  %v1028 = vld [vmem:[%s8 + $0x4] sm:$0xf]
  %v1029 = vld [vmem:[%s8 + $0x8] sm:$0xf]
  %v1030 = vld [vmem:[%s8 + $0xc] sm:$0xf]
  %v1031 = vld [vmem:[%s8 + $0x10] sm:$0xf]
  %v1032 = vld [vmem:[%s8 + $0x14] sm:$0xf]
  %v1039 = vunpack.c.l.b16 %v1027
  %v1040 = vunpack.c.l.b16 %v1028
  %v1041 = vunpack.c.l.b16 %v1029
  %v1042 = vunpack.c.l.b16 %v1030
  %v1043 = vunpack.c.l.b16 %v1031
  %v1044 = vunpack.c.l.b16 %v1032
  %v1045 = vpack.c.b16 %v1040, %v1039
  %v1046 = vpack.c.b16 %v1042, %v1041
  %v1047 = vpack.c.b16 %v1044, %v1043
  %vm1051 = vcmask 392192
  %v1053 = vsel %vm1051, %v1026, 0
  %1055 = vmatprep.subr.bf16.mxu0 0
  %1056 = vmatpush1.bf16.msra.mxu0 0
  %1057 = vmatprep.subr.bf16.mxu0 0
  %1058 = vmatpush1.bf16.msra.mxu0 0
  %1059 = vmatprep.subr.bf16.mxu0 0
  %1060 = vmatpush1.bf16.msra.mxu0 0
  %1061 = vmatprep.subr.bf16.mxu0 0
  %1062 = vmatpush1.bf16.msra.mxu0 0
  %1063 = vmatprep.subr.bf16.mxu0 0
  %1064 = vmatpush1.bf16.msra.mxu0 0
  %1065 = vmatprep.subr.bf16.mxu0 0
  %1066 = vmatpush1.bf16.msra.mxu0 %v1047
  %1067 = vmatprep.subr.bf16.mxu0 0
  %1068 = vmatpush1.bf16.msra.mxu0 %v1046
  %1069 = vmatprep.subr.bf16.mxu0 0
  %1070 = vmatpush1.bf16.msra.mxu0 %v1045
  %1071 = vmatprep.subr.bf16.mxu0 0
  %1072 = vmatpush2.bf16.msra.mxu0 0
  %1073 = vmatprep.subr.bf16.mxu0 0
  %1074 = vmatpush2.bf16.msra.mxu0 0
  %1075 = vmatprep.subr.bf16.mxu0 0
  %1076 = vmatpush2.bf16.msra.mxu0 0
  %1077 = vmatprep.subr.bf16.mxu0 0
  %1078 = vmatpush2.bf16.msra.mxu0 0
  %1079 = vmatprep.subr.bf16.mxu0 0
  %1080 = vmatpush2.bf16.msra.mxu0 0
  %1081 = vmatprep.subr.bf16.mxu0 0
  %1082 = vmatpush2.bf16.msra.mxu0 0
  %1083 = vmatprep.subr.bf16.mxu0 0
  %1084 = vmatpush2.bf16.msra.mxu0 0
  %1085 = vmatprep.subr.bf16.mxu0 0
  %1086 = vmatpush2.bf16.msra.mxu0 0
  %1087 = vmatprep.mubr.bf16.mxu0 0
  %1088 = vmatmul.mubr.bf16.gmra.mxu0 %v1053
  %v1089 = vpop.f32.mrf.mxu0
  %v1090 = vadd.f32 0.0, %v1089
  %v1091 = vpop.f32.mrf.mxu0
  %v1092 = vpop.f32.mrf.mxu0
  %v1093 = vadd.f32 0.0, %v1092
  %v1094 = vpop.f32.mrf.mxu0
  %1095 = vdwg.mxu0
  %v1096 = vmax.f32 %v1090, 0.0
  %v1097 = vmax.f32 %v1093, 0.0
  %v1099 = vrot.slane %v1096, 2
  %v1101 = vmax.f32 %v1096, %v1099
  %v1102 = vld [vmem:[%s9] sm:$0x1]
  %v1103 = vlaneseq
  %v1104 = vshrl.u32 %v1103, 7
  %v1105 = vsub.s32 0, %v1104
  %v1106 = vrot.slane %v1102, %v1105
  %v1107 = vmul.f32 %v1101, %v1106
  %vm1108 = vcmask 123904
  %v1109 = vsel %vm1108, %v1107, 0.0
  %1110 = vadd.xlane.f32.xlu0 %v1109
  %v1111 = vpop.xlane.xlu0 %1110
  %v1112 = vadd.f32 %v1111, 0.0
  %v1113 = vld [vmem:[%s9 + $0x1] sm:$0x1]
  %v1114 = vlaneseq
  %v1115 = vshrl.u32 %v1114, 7
  %v1116 = vsub.s32 0, %v1115
  %v1117 = vrot.slane %v1113, %v1116
  %v1118 = vmul.f32 %v1101, %v1117
  %vm1119 = vcmask 128004
  %v1120 = vsel %vm1119, %v1118, 0.0
  %1121 = vadd.xlane.f32.xlu0 %v1120
  %v1122 = vpop.xlane.xlu0 %1121
  %v1124 = vrot.slane %v1122, 4
  %v1126 = vadd.f32 %v1112, %v1124
  %v1128 = vrot.slane %v1097, 2
  %v1130 = vmax.f32 %v1097, %v1128
  %v1131 = vld [vmem:[%s9 + $0x2] sm:$0x1]
  %v1132 = vlaneseq
  %v1133 = vshrl.u32 %v1132, 7
  %v1134 = vsub.s32 0, %v1133
  %v1135 = vrot.slane %v1131, %v1134
  %v1136 = vmul.f32 %v1130, %v1135
  %v1137 = vsel %vm1108, %v1136, 0.0
  %1138 = vadd.xlane.f32.xlu0 %v1137
  %v1139 = vpop.xlane.xlu0 %1138
  %v1140 = vadd.f32 %v1126, %v1139
  %v1141 = vld [vmem:[%s9 + $0x3] sm:$0x1]
  %v1142 = vlaneseq
  %v1143 = vshrl.u32 %v1142, 7
  %v1144 = vsub.s32 0, %v1143
  %v1145 = vrot.slane %v1141, %v1144
  %v1146 = vmul.f32 %v1130, %v1145
  %v1147 = vsel %vm1119, %v1146, 0.0
  %1148 = vadd.xlane.f32.xlu0 %v1147
  %v1149 = vpop.xlane.xlu0 %1148
  %v1151 = vrot.slane %v1149, 4
  %v1153 = vadd.f32 %v1140, %v1151
  %v1154 = vxor.u32 %v1153, 2147483648
  %v1155 = vmul.f32 %v1154, 1.442695
  %v1156 = vpow.pop %v1155
  %v1157 = vadd.f32 %v1156, 1.0
  %v1158 = vrcp.pop %v1157
  %v1159 = vmul.f32 1.0, %v1158
  %vm1160 = vcmask 1024
  %1161 = vst.msk [vmem:[%s10] sm:$0x3] %vm1160, %v1159
  // Predicated region
  $region42: #{forward.1} parent=0 // pred_check
    _
  $region43: #{forward.1} parent=0 // pred_check_branch
    %1163 = sbr.rel (0) target = $region45
  $region44: #{forward.1} parent=0 // pred_region
    _
  $region45: #{forward.1} parent=0 // pred_fallthru
    _
  // Predicated region
  $region46: #{forward.1} parent=0 // pred_check
    _
  $region47: #{forward.1} parent=0 // pred_check_branch
    %1165 = sbr.rel (0) target = $region49
  $region48: #{forward.1} parent=0 // pred_region
    _
  $region49: #{forward.1} parent=0 // pred_fallthru
    _

</llo_original>
